<compile_context>
chip_gen: v7x
topology: tpu7x:2x2x1
jax: 0.10.0
libtpu: 0.0.40
codegen_flags: <defaults>
</compile_context>

<pallas_src>
import functools

import jax
import jax.numpy as jnp
import numpy as np
from jax import lax
from jax.experimental import pallas as pl
from jax.experimental.pallas import tpu as pltpu


def _round_up(x, m):
    return ((x + m - 1) // m) * m


# ---------------------------------------------------------------------------
# Kernel 1: the serial LSTM recurrence (the only truly sequential part).
# ---------------------------------------------------------------------------
def _lstm_recurrence_kernel(pre_ref,    # (L, Bt, 4*Hp) precomputed input gates
                            h0_ref,     # (Bt, Hp) initial hidden (zero-padded)
                            c0_ref,     # (Bt, Hp) initial cell   (zero-padded)
                            whh_ref,    # (Hc, 4*Hp) recurrent weight, K NOT padded to 128
                            hall_ref,   # (L, Bt, Hp) all hidden states (out)
                            hout_ref,   # (Bt, Hp) final hidden (out)
                            cout_ref,   # (Bt, Hp) final cell   (out)
                            *, seq_len, hid_pad):
    L, Hp = seq_len, hid_pad
    Hc = whh_ref.shape[0]

    # Loop-invariant recurrent weight: (Hc, 4*Hp) f32 (e.g. 32x512 = 16 vregs),
    # loaded once and held in registers across the unrolled recurrence instead
    # of being re-streamed from VMEM every timestep.
    whh = whh_ref[...]

    # Correctness of the padding relies on zero-fill invariants:
    #   pre / whh padded lanes == 0 and h0/c0 padded lanes == 0
    #   => gates_pad = 0, c_pad stays 0, h_pad = sigmoid(0)*tanh(0) = 0.
    def step(t, carry):
        h_prev, c_prev = carry                                  # (Bt, Hp) each
        gates = pre_ref[t] + jnp.dot(
            h_prev[:, :Hc], whh, preferred_element_type=jnp.float32)
        # Hp is a multiple of 128 -> every gate slice is lane-tile aligned.
        i_g = jax.nn.sigmoid(gates[:, 0 * Hp:1 * Hp])
        f_g = jax.nn.sigmoid(gates[:, 1 * Hp:2 * Hp])
        g_g = jnp.tanh(gates[:, 2 * Hp:3 * Hp])
        o_g = jax.nn.sigmoid(gates[:, 3 * Hp:4 * Hp])
        c_new = f_g * c_prev + i_g * g_g
        h_new = o_g * jnp.tanh(c_new)
        hall_ref[t] = h_new                                     # sublane/lane aligned
        return (h_new, c_new)

    # Full unroll for short sequences (LLO scheduler visibility); bounded
    # partial unroll if L grows so code size / vreg live ranges stay sane.
    h_fin, c_fin = lax.fori_loop(
        0, L, step, (h0_ref[...], c0_ref[...]),
        unroll=(True if L <= 32 else 8))

    hout_ref[...] = h_fin
    cout_ref[...] = c_fin


# ---------------------------------------------------------------------------
# Kernel 2: fully parallel vocab projection, row-tiled over timesteps.
# ---------------------------------------------------------------------------
def _vocab_proj_kernel(h_ref,       # (1, Bt, Hp)
                       w_ref,       # (Hp, Vp)
                       b_ref,       # (1, Vp)
                       s_ref):      # (1, Bt, Vp)
    s_ref[0] = (jnp.dot(h_ref[0], w_ref[...],
                        preferred_element_type=jnp.float32) + b_ref[...])


def char_decoder_forward(input_ids, params, dec_hidden=None):
    """Pallas implementation of CharDecoder.forward.

    input_ids : (L, B) int32 character ids
    params    : dict with 'emb' (V,E), 'w_ih' (4H,E), 'w_hh' (4H,H),
                'b_ih' (4H,), 'b_hh' (4H,), 'w_proj' (V,H), 'b_proj' (V,)
    dec_hidden: optional tuple of two (1, B, H) f32 arrays
    returns   : (scores (L,B,V), (h_n (1,B,H), c_n (1,B,H)))
    """
    L, B = input_ids.shape
    V, E = params["emb"].shape
    H = params["w_hh"].shape[1]
    f32 = jnp.float32

    Hp = _round_up(H, 128)      # per-gate lane tile -> lane-aligned gate slices
    Hc = _round_up(H, 8)        # W_hh contraction axis: sublane granule only
    Vp = _round_up(V, 128)      # lane-dense scores store
    Bp = _round_up(B, 8)        # sublane-aligned batch rows
    # Shard the batch across TensorCores (v7x has 2) when there is enough work.
    nb = 2 if (Bp >= 16 and Bp % 16 == 0) else 1
    Bt = Bp // nb

    # ---- gate table: embedding x W_ih^T + (b_ih+b_hh), gate-padded ---------
    gate_small = (params["emb"].astype(f32) @ params["w_ih"].astype(f32).T
                  + (params["b_ih"] + params["b_hh"]).astype(f32))       # (V, 4H)
    gate_table = (jnp.zeros((V, 4, Hp), f32)
                  .at[:, :, :H].set(gate_small.reshape(V, 4, H))
                  .reshape(V, 4 * Hp))
    # Per-(t, b) input gates are a pure gather of the tiny table (plain XLA).
    ids_pad = jnp.zeros((L, Bp), jnp.int32).at[:, :B].set(input_ids.astype(jnp.int32))
    pre = jnp.take(gate_table, ids_pad, axis=0)                          # (L, Bp, 4*Hp)

    # ---- initial state (padding MUST stay zero: kernel relies on it) -------
    if dec_hidden is None:
        h0 = jnp.zeros((1, B, H), f32)
        c0 = jnp.zeros((1, B, H), f32)
    else:
        h0, c0 = dec_hidden
    h0_k = jnp.zeros((Bp, Hp), f32).at[:B, :H].set(h0[0].astype(f32))
    c0_k = jnp.zeros((Bp, Hp), f32).at[:B, :H].set(c0[0].astype(f32))

    # ---- recurrent weight: whh_k[i, g*Hp + o] = W_hh[g*H + o, i] ------------
    whh_k = (jnp.zeros((4, Hp, Hc), f32)
             .at[:, :H, :H].set(params["w_hh"].astype(f32).reshape(4, H, H))
             .transpose(2, 0, 1).reshape(Hc, 4 * Hp))

    rec_kernel = functools.partial(_lstm_recurrence_kernel, seq_len=L, hid_pad=Hp)

    rec_in_b = 4 * (L * Bt * 4 * Hp + 2 * Bt * Hp + Hc * 4 * Hp)
    rec_out_b = 4 * (L * Bt * Hp + 2 * Bt * Hp)
    rec_vmem = int(min(max(2 * (rec_in_b + rec_out_b) + (4 << 20), 32 << 20), 64 << 20))

    h_all, h_fin, c_fin = pl.pallas_call(
        rec_kernel,
        out_shape=(
            jax.ShapeDtypeStruct((L, Bp, Hp), f32),
            jax.ShapeDtypeStruct((Bp, Hp), f32),
            jax.ShapeDtypeStruct((Bp, Hp), f32),
        ),
        grid_spec=pltpu.PrefetchScalarGridSpec(
            num_scalar_prefetch=0,
            grid=(nb,),                                   # batch shards (v7x megacore)
            in_specs=[
                pl.BlockSpec((L, Bt, 4 * Hp), lambda i: (0, i, 0)),   # pre
                pl.BlockSpec((Bt, Hp), lambda i: (i, 0)),             # h0
                pl.BlockSpec((Bt, Hp), lambda i: (i, 0)),             # c0
                pl.BlockSpec((Hc, 4 * Hp), lambda i: (0, 0)),         # W_hh^T
            ],
            out_specs=[
                pl.BlockSpec((L, Bt, Hp), lambda i: (0, i, 0)),       # h_all
                pl.BlockSpec((Bt, Hp), lambda i: (i, 0)),             # h_n
                pl.BlockSpec((Bt, Hp), lambda i: (i, 0)),             # c_n
            ],
        ),
        compiler_params=pltpu.CompilerParams(
            dimension_semantics=("parallel",),
            vmem_limit_bytes=rec_vmem,
        ),
    )(pre, h0_k, c0_k, whh_k)

    # ---- vocab projection: separate row-tiled, fully parallel kernel -------
    wproj_k = jnp.zeros((Hp, Vp), f32).at[:H, :V].set(params["w_proj"].astype(f32).T)
    bproj_k = jnp.zeros((1, Vp), f32).at[0, :V].set(params["b_proj"].astype(f32))

    proj_in_b = 4 * (Bp * Hp + Hp * Vp + Vp)
    proj_out_b = 4 * (Bp * Vp)
    proj_vmem = int(min(max(2 * (proj_in_b + proj_out_b) + (4 << 20), 32 << 20), 64 << 20))

    scores_pad = pl.pallas_call(
        _vocab_proj_kernel,
        out_shape=jax.ShapeDtypeStruct((L, Bp, Vp), f32),
        grid_spec=pltpu.PrefetchScalarGridSpec(
            num_scalar_prefetch=0,
            grid=(L,),
            in_specs=[
                pl.BlockSpec((1, Bp, Hp), lambda t: (t, 0, 0)),       # h_t tile
                pl.BlockSpec((Hp, Vp), lambda t: (0, 0)),             # W_proj^T
                pl.BlockSpec((1, Vp), lambda t: (0, 0)),              # b_proj
            ],
            out_specs=pl.BlockSpec((1, Bp, Vp), lambda t: (t, 0, 0)),
        ),
        compiler_params=pltpu.CompilerParams(
            dimension_semantics=("parallel",),
            vmem_limit_bytes=proj_vmem,
        ),
    )(h_all, wproj_k, bproj_k)

    scores = scores_pad[:, :B, :V]
    h_n = h_fin[:B, :H].reshape(1, B, H)
    c_n = c_fin[:B, :H].reshape(1, B, H)
    return scores, (h_n, c_n)


# ------------------------- pure-JAX reference -------------------------
def _reference_forward(input_ids, params, dec_hidden):
    H = params["w_hh"].shape[1]
    x_emb = jnp.take(params["emb"], input_ids, axis=0)
    h0, c0 = dec_hidden

    def step(carry, x_t):
        h, c = carry
        gates = (x_t @ params["w_ih"].T + h @ params["w_hh"].T
                 + params["b_ih"] + params["b_hh"])
        i_g = jax.nn.sigmoid(gates[:, 0 * H:1 * H])
        f_g = jax.nn.sigmoid(gates[:, 1 * H:2 * H])
        g_g = jnp.tanh(gates[:, 2 * H:3 * H])
        o_g = jax.nn.sigmoid(gates[:, 3 * H:4 * H])
        c_new = f_g * c + i_g * g_g
        h_new = o_g * jnp.tanh(c_new)
        s = h_new @ params["w_proj"].T + params["b_proj"]
        return (h_new, c_new), s

    (h_n, c_n), scores = jax.lax.scan(step, (h0[0], c0[0]), x_emb)
    return scores, (h_n[None], c_n[None])


if __name__ == "__main__":
    # Small shapes consistent with CharDecoder: char vocab, char embeddings, LSTM.
    L, B = 8, 2            # (length, batch)
    E = 50                 # char_embedding_size
    H = 32                 # hidden_size
    V = 30                 # len(target_vocab.char2id)
    PAD_IDX = 0            # target_vocab.char2id['<pad>']

    key = jax.random.PRNGKey(0)
    ks = jax.random.split(key, 8)

    emb = jax.random.normal(ks[0], (V, E), jnp.float32) * 0.1
    emb = emb.at[PAD_IDX].set(0.0)  # padding_idx row is zero, like nn.Embedding
    params = {
        "emb": emb,
        "w_ih": jax.random.normal(ks[1], (4 * H, E), jnp.float32) * 0.1,
        "w_hh": jax.random.normal(ks[2], (4 * H, H), jnp.float32) * 0.1,
        "b_ih": jax.random.normal(ks[3], (4 * H,), jnp.float32) * 0.1,
        "b_hh": jax.random.normal(ks[4], (4 * H,), jnp.float32) * 0.1,
        "w_proj": jax.random.normal(ks[5], (V, H), jnp.float32) * 0.1,
        "b_proj": jax.random.normal(ks[6], (V,), jnp.float32) * 0.1,
    }

    input_ids = jax.random.randint(ks[7], (L, B), 1, V, dtype=jnp.int32)
    h0 = jax.random.normal(jax.random.PRNGKey(1), (1, B, H), jnp.float32) * 0.1
    c0 = jax.random.normal(jax.random.PRNGKey(2), (1, B, H), jnp.float32) * 0.1

    scores, (h_n, c_n) = char_decoder_forward(input_ids, params, (h0, c0))
    jax.block_until_ready((scores, h_n, c_n))

    ref_scores, (ref_h, ref_c) = _reference_forward(input_ids, params, (h0, c0))
    np.testing.assert_allclose(np.asarray(scores), np.asarray(ref_scores),
                               rtol=1e-3, atol=1e-3)
    np.testing.assert_allclose(np.asarray(h_n), np.asarray(ref_h),
                               rtol=1e-3, atol=1e-3)
    np.testing.assert_allclose(np.asarray(c_n), np.asarray(ref_c),
                               rtol=1e-3, atol=1e-3)

    assert scores.shape == (L, B, V)
    assert h_n.shape == (1, B, H) and c_n.shape == (1, B, H)

    # TODO(synk): train_forward (masked CE sum) and decode_greedy (python string
    # assembly loop) are host-side control flow around forward(); not kernelized.
    print("KERNEL_OK")
</pallas_src>

<mosaic_0001>
module attributes {stable_mosaic.version = 11 : i64} {
  func.func @_lstm_recurrence_kernel(%arg0: i32, %arg1: memref<8x8x512xf32, #tpu.memory_space<vmem>>, %arg2: memref<8x128xf32, #tpu.memory_space<vmem>>, %arg3: memref<8x128xf32, #tpu.memory_space<vmem>>, %arg4: memref<32x512xf32, #tpu.memory_space<vmem>>, %arg5: memref<8x8x128xf32, #tpu.memory_space<vmem>>, %arg6: memref<8x128xf32, #tpu.memory_space<vmem>>, %arg7: memref<8x128xf32, #tpu.memory_space<vmem>>) attributes {dimension_semantics = [#tpu.dimension_semantics<parallel>], iteration_bounds = array<i64: 1>, scalar_prefetch = 0 : i64, scratch_operands = 0 : i64, tpu.core_type = #tpu.core_type<tc>, window_params = [{transform_indices = @transform_0, window_bounds = array<i64: 8, 8, 512>}, {transform_indices = @transform_1, window_bounds = array<i64: 8, 128>}, {transform_indices = @transform_2, window_bounds = array<i64: 8, 128>}, {pipeline_mode = #tpu.pipeline_mode<synchronous>, transform_indices = @transform_3, window_bounds = array<i64: 32, 512>}, {transform_indices = @transform_4, window_bounds = array<i64: 8, 8, 128>}, {transform_indices = @transform_5, window_bounds = array<i64: 8, 128>}, {transform_indices = @transform_6, window_bounds = array<i64: 8, 128>}]} {
    %c0 = arith.constant 0 : index
    %c0_0 = arith.constant 0 : index
    %0 = vector.load %arg4[%c0, %c0_0] : memref<32x512xf32, #tpu.memory_space<vmem>>, vector<32x512xf32>
    %c0_1 = arith.constant 0 : index
    %c0_2 = arith.constant 0 : index
    %1 = vector.load %arg2[%c0_1, %c0_2] : memref<8x128xf32, #tpu.memory_space<vmem>>, vector<8x128xf32>
    %c0_3 = arith.constant 0 : index
    %c0_4 = arith.constant 0 : index
    %2 = vector.load %arg3[%c0_3, %c0_4] : memref<8x128xf32, #tpu.memory_space<vmem>>, vector<8x128xf32>
    %c0_i32 = arith.constant 0 : i32
    %3 = arith.index_cast %c0_i32 : i32 to index
    %c0_5 = arith.constant 0 : index
    %c0_6 = arith.constant 0 : index
    %4 = vector.load %arg1[%3, %c0_5, %c0_6] : memref<8x8x512xf32, #tpu.memory_space<vmem>>, vector<1x8x512xf32>
    %5 = vector.shape_cast %4 : vector<1x8x512xf32> to vector<8x512xf32>
    %6 = vector.extract_strided_slice %1 {offsets = [0, 0], sizes = [8, 32], strides = [1, 1]} : vector<8x128xf32> to vector<8x32xf32>
    %cst = arith.constant dense<0.000000e+00> : vector<8x512xf32>
    %7 = tpu.matmul %6, %0, %cst {dimension_numbers = #tpu.dot_dimension_numbers<[1], [0], [0], [1], [0, 0, 1, 1], [], []>} : vector<8x32xf32>, vector<32x512xf32>, vector<8x512xf32> -> vector<8x512xf32>
    %8 = arith.addf %5, %7 : vector<8x512xf32>
    %9 = vector.extract_strided_slice %8 {offsets = [0, 0], sizes = [8, 128], strides = [1, 1]} : vector<8x512xf32> to vector<8x128xf32>
    %10 = arith.negf %9 : vector<8x128xf32>
    %11 = math.exp %10 : vector<8x128xf32>
    %cst_7 = arith.constant 1.000000e+00 : f32
    %12 = vector.broadcast %cst_7 : f32 to vector<8x128xf32>
    %13 = arith.addf %12, %11 : vector<8x128xf32>
    %14 = arith.divf %12, %13 : vector<8x128xf32>
    %15 = vector.extract_strided_slice %8 {offsets = [0, 128], sizes = [8, 128], strides = [1, 1]} : vector<8x512xf32> to vector<8x128xf32>
    %16 = arith.negf %15 : vector<8x128xf32>
    %17 = math.exp %16 : vector<8x128xf32>
    %cst_8 = arith.constant 1.000000e+00 : f32
    %18 = vector.broadcast %cst_8 : f32 to vector<8x128xf32>
    %19 = arith.addf %18, %17 : vector<8x128xf32>
    %20 = arith.divf %18, %19 : vector<8x128xf32>
    %21 = vector.extract_strided_slice %8 {offsets = [0, 256], sizes = [8, 128], strides = [1, 1]} : vector<8x512xf32> to vector<8x128xf32>
    %22 = math.tanh %21 : vector<8x128xf32>
    %23 = vector.extract_strided_slice %8 {offsets = [0, 384], sizes = [8, 128], strides = [1, 1]} : vector<8x512xf32> to vector<8x128xf32>
    %24 = arith.negf %23 : vector<8x128xf32>
    %25 = math.exp %24 : vector<8x128xf32>
    %cst_9 = arith.constant 1.000000e+00 : f32
    %26 = vector.broadcast %cst_9 : f32 to vector<8x128xf32>
    %27 = arith.addf %26, %25 : vector<8x128xf32>
    %28 = arith.divf %26, %27 : vector<8x128xf32>
    %29 = arith.mulf %20, %2 : vector<8x128xf32>
    %30 = arith.mulf %14, %22 : vector<8x128xf32>
    %31 = arith.addf %29, %30 : vector<8x128xf32>
    %32 = math.tanh %31 : vector<8x128xf32>
    %33 = arith.mulf %28, %32 : vector<8x128xf32>
    %34 = arith.index_cast %c0_i32 : i32 to index
    %c0_10 = arith.constant 0 : index
    %c0_11 = arith.constant 0 : index
    %35 = vector.load %arg5[%34, %c0_10, %c0_11] : memref<8x8x128xf32, #tpu.memory_space<vmem>>, vector<1x8x128xf32>
    %36 = vector.shape_cast %35 : vector<1x8x128xf32> to vector<8x128xf32>
    %37 = vector.shape_cast %33 : vector<8x128xf32> to vector<1x8x128xf32>
    tpu.vector_store %arg5[%34, %c0_10, %c0_11], %37 {strides = array<i32>} : memref<8x8x128xf32, #tpu.memory_space<vmem>>, vector<1x8x128xf32>,
    %c1_i32 = arith.constant 1 : i32
    %38 = arith.index_cast %c1_i32 : i32 to index
    %c0_12 = arith.constant 0 : index
    %c0_13 = arith.constant 0 : index
    %39 = vector.load %arg1[%38, %c0_12, %c0_13] : memref<8x8x512xf32, #tpu.memory_space<vmem>>, vector<1x8x512xf32>
    %40 = vector.shape_cast %39 : vector<1x8x512xf32> to vector<8x512xf32>
    %41 = vector.extract_strided_slice %33 {offsets = [0, 0], sizes = [8, 32], strides = [1, 1]} : vector<8x128xf32> to vector<8x32xf32>
    %cst_14 = arith.constant dense<0.000000e+00> : vector<8x512xf32>
    %42 = tpu.matmul %41, %0, %cst_14 {dimension_numbers = #tpu.dot_dimension_numbers<[1], [0], [0], [1], [0, 0, 1, 1], [], []>} : vector<8x32xf32>, vector<32x512xf32>, vector<8x512xf32> -> vector<8x512xf32>
    %43 = arith.addf %40, %42 : vector<8x512xf32>
    %44 = vector.extract_strided_slice %43 {offsets = [0, 0], sizes = [8, 128], strides = [1, 1]} : vector<8x512xf32> to vector<8x128xf32>
    %45 = arith.negf %44 : vector<8x128xf32>
    %46 = math.exp %45 : vector<8x128xf32>
    %cst_15 = arith.constant 1.000000e+00 : f32
    %47 = vector.broadcast %cst_15 : f32 to vector<8x128xf32>
    %48 = arith.addf %47, %46 : vector<8x128xf32>
    %49 = arith.divf %47, %48 : vector<8x128xf32>
    %50 = vector.extract_strided_slice %43 {offsets = [0, 128], sizes = [8, 128], strides = [1, 1]} : vector<8x512xf32> to vector<8x128xf32>
    %51 = arith.negf %50 : vector<8x128xf32>
    %52 = math.exp %51 : vector<8x128xf32>
    %cst_16 = arith.constant 1.000000e+00 : f32
    %53 = vector.broadcast %cst_16 : f32 to vector<8x128xf32>
    %54 = arith.addf %53, %52 : vector<8x128xf32>
    %55 = arith.divf %53, %54 : vector<8x128xf32>
    %56 = vector.extract_strided_slice %43 {offsets = [0, 256], sizes = [8, 128], strides = [1, 1]} : vector<8x512xf32> to vector<8x128xf32>
    %57 = math.tanh %56 : vector<8x128xf32>
    %58 = vector.extract_strided_slice %43 {offsets = [0, 384], sizes = [8, 128], strides = [1, 1]} : vector<8x512xf32> to vector<8x128xf32>
    %59 = arith.negf %58 : vector<8x128xf32>
    %60 = math.exp %59 : vector<8x128xf32>
    %cst_17 = arith.constant 1.000000e+00 : f32
    %61 = vector.broadcast %cst_17 : f32 to vector<8x128xf32>
    %62 = arith.addf %61, %60 : vector<8x128xf32>
    %63 = arith.divf %61, %62 : vector<8x128xf32>
    %64 = arith.mulf %55, %31 : vector<8x128xf32>
    %65 = arith.mulf %49, %57 : vector<8x128xf32>
    %66 = arith.addf %64, %65 : vector<8x128xf32>
    %67 = math.tanh %66 : vector<8x128xf32>
    %68 = arith.mulf %63, %67 : vector<8x128xf32>
    %69 = arith.index_cast %c1_i32 : i32 to index
    %c0_18 = arith.constant 0 : index
    %c0_19 = arith.constant 0 : index
    %70 = vector.load %arg5[%69, %c0_18, %c0_19] : memref<8x8x128xf32, #tpu.memory_space<vmem>>, vector<1x8x128xf32>
    %71 = vector.shape_cast %70 : vector<1x8x128xf32> to vector<8x128xf32>
    %72 = vector.shape_cast %68 : vector<8x128xf32> to vector<1x8x128xf32>
    tpu.vector_store %arg5[%69, %c0_18, %c0_19], %72 {strides = array<i32>} : memref<8x8x128xf32, #tpu.memory_space<vmem>>, vector<1x8x128xf32>,
    %c2_i32 = arith.constant 2 : i32
    %73 = arith.index_cast %c2_i32 : i32 to index
    %c0_20 = arith.constant 0 : index
    %c0_21 = arith.constant 0 : index
    %74 = vector.load %arg1[%73, %c0_20, %c0_21] : memref<8x8x512xf32, #tpu.memory_space<vmem>>, vector<1x8x512xf32>
    %75 = vector.shape_cast %74 : vector<1x8x512xf32> to vector<8x512xf32>
    %76 = vector.extract_strided_slice %68 {offsets = [0, 0], sizes = [8, 32], strides = [1, 1]} : vector<8x128xf32> to vector<8x32xf32>
    %cst_22 = arith.constant dense<0.000000e+00> : vector<8x512xf32>
    %77 = tpu.matmul %76, %0, %cst_22 {dimension_numbers = #tpu.dot_dimension_numbers<[1], [0], [0], [1], [0, 0, 1, 1], [], []>} : vector<8x32xf32>, vector<32x512xf32>, vector<8x512xf32> -> vector<8x512xf32>
    %78 = arith.addf %75, %77 : vector<8x512xf32>
    %79 = vector.extract_strided_slice %78 {offsets = [0, 0], sizes = [8, 128], strides = [1, 1]} : vector<8x512xf32> to vector<8x128xf32>
    %80 = arith.negf %79 : vector<8x128xf32>
    %81 = math.exp %80 : vector<8x128xf32>
    %cst_23 = arith.constant 1.000000e+00 : f32
    %82 = vector.broadcast %cst_23 : f32 to vector<8x128xf32>
    %83 = arith.addf %82, %81 : vector<8x128xf32>
    %84 = arith.divf %82, %83 : vector<8x128xf32>
    %85 = vector.extract_strided_slice %78 {offsets = [0, 128], sizes = [8, 128], strides = [1, 1]} : vector<8x512xf32> to vector<8x128xf32>
    %86 = arith.negf %85 : vector<8x128xf32>
    %87 = math.exp %86 : vector<8x128xf32>
    %cst_24 = arith.constant 1.000000e+00 : f32
    %88 = vector.broadcast %cst_24 : f32 to vector<8x128xf32>
    %89 = arith.addf %88, %87 : vector<8x128xf32>
    %90 = arith.divf %88, %89 : vector<8x128xf32>
    %91 = vector.extract_strided_slice %78 {offsets = [0, 256], sizes = [8, 128], strides = [1, 1]} : vector<8x512xf32> to vector<8x128xf32>
    %92 = math.tanh %91 : vector<8x128xf32>
    %93 = vector.extract_strided_slice %78 {offsets = [0, 384], sizes = [8, 128], strides = [1, 1]} : vector<8x512xf32> to vector<8x128xf32>
    %94 = arith.negf %93 : vector<8x128xf32>
    %95 = math.exp %94 : vector<8x128xf32>
    %cst_25 = arith.constant 1.000000e+00 : f32
    %96 = vector.broadcast %cst_25 : f32 to vector<8x128xf32>
    %97 = arith.addf %96, %95 : vector<8x128xf32>
    %98 = arith.divf %96, %97 : vector<8x128xf32>
    %99 = arith.mulf %90, %66 : vector<8x128xf32>
    %100 = arith.mulf %84, %92 : vector<8x128xf32>
    %101 = arith.addf %99, %100 : vector<8x128xf32>
    %102 = math.tanh %101 : vector<8x128xf32>
    %103 = arith.mulf %98, %102 : vector<8x128xf32>
    %104 = arith.index_cast %c2_i32 : i32 to index
    %c0_26 = arith.constant 0 : index
    %c0_27 = arith.constant 0 : index
    %105 = vector.load %arg5[%104, %c0_26, %c0_27] : memref<8x8x128xf32, #tpu.memory_space<vmem>>, vector<1x8x128xf32>
    %106 = vector.shape_cast %105 : vector<1x8x128xf32> to vector<8x128xf32>
    %107 = vector.shape_cast %103 : vector<8x128xf32> to vector<1x8x128xf32>
    tpu.vector_store %arg5[%104, %c0_26, %c0_27], %107 {strides = array<i32>} : memref<8x8x128xf32, #tpu.memory_space<vmem>>, vector<1x8x128xf32>,
    %c3_i32 = arith.constant 3 : i32
    %108 = arith.index_cast %c3_i32 : i32 to index
    %c0_28 = arith.constant 0 : index
    %c0_29 = arith.constant 0 : index
    %109 = vector.load %arg1[%108, %c0_28, %c0_29] : memref<8x8x512xf32, #tpu.memory_space<vmem>>, vector<1x8x512xf32>
    %110 = vector.shape_cast %109 : vector<1x8x512xf32> to vector<8x512xf32>
    %111 = vector.extract_strided_slice %103 {offsets = [0, 0], sizes = [8, 32], strides = [1, 1]} : vector<8x128xf32> to vector<8x32xf32>
    %cst_30 = arith.constant dense<0.000000e+00> : vector<8x512xf32>
    %112 = tpu.matmul %111, %0, %cst_30 {dimension_numbers = #tpu.dot_dimension_numbers<[1], [0], [0], [1], [0, 0, 1, 1], [], []>} : vector<8x32xf32>, vector<32x512xf32>, vector<8x512xf32> -> vector<8x512xf32>
    %113 = arith.addf %110, %112 : vector<8x512xf32>
    %114 = vector.extract_strided_slice %113 {offsets = [0, 0], sizes = [8, 128], strides = [1, 1]} : vector<8x512xf32> to vector<8x128xf32>
    %115 = arith.negf %114 : vector<8x128xf32>
    %116 = math.exp %115 : vector<8x128xf32>
    %cst_31 = arith.constant 1.000000e+00 : f32
    %117 = vector.broadcast %cst_31 : f32 to vector<8x128xf32>
    %118 = arith.addf %117, %116 : vector<8x128xf32>
    %119 = arith.divf %117, %118 : vector<8x128xf32>
    %120 = vector.extract_strided_slice %113 {offsets = [0, 128], sizes = [8, 128], strides = [1, 1]} : vector<8x512xf32> to vector<8x128xf32>
    %121 = arith.negf %120 : vector<8x128xf32>
    %122 = math.exp %121 : vector<8x128xf32>
    %cst_32 = arith.constant 1.000000e+00 : f32
    %123 = vector.broadcast %cst_32 : f32 to vector<8x128xf32>
    %124 = arith.addf %123, %122 : vector<8x128xf32>
    %125 = arith.divf %123, %124 : vector<8x128xf32>
    %126 = vector.extract_strided_slice %113 {offsets = [0, 256], sizes = [8, 128], strides = [1, 1]} : vector<8x512xf32> to vector<8x128xf32>
    %127 = math.tanh %126 : vector<8x128xf32>
    %128 = vector.extract_strided_slice %113 {offsets = [0, 384], sizes = [8, 128], strides = [1, 1]} : vector<8x512xf32> to vector<8x128xf32>
    %129 = arith.negf %128 : vector<8x128xf32>
    %130 = math.exp %129 : vector<8x128xf32>
    %cst_33 = arith.constant 1.000000e+00 : f32
    %131 = vector.broadcast %cst_33 : f32 to vector<8x128xf32>
    %132 = arith.addf %131, %130 : vector<8x128xf32>
    %133 = arith.divf %131, %132 : vector<8x128xf32>
    %134 = arith.mulf %125, %101 : vector<8x128xf32>
    %135 = arith.mulf %119, %127 : vector<8x128xf32>
    %136 = arith.addf %134, %135 : vector<8x128xf32>
    %137 = math.tanh %136 : vector<8x128xf32>
    %138 = arith.mulf %133, %137 : vector<8x128xf32>
    %139 = arith.index_cast %c3_i32 : i32 to index
    %c0_34 = arith.constant 0 : index
    %c0_35 = arith.constant 0 : index
    %140 = vector.load %arg5[%139, %c0_34, %c0_35] : memref<8x8x128xf32, #tpu.memory_space<vmem>>, vector<1x8x128xf32>
    %141 = vector.shape_cast %140 : vector<1x8x128xf32> to vector<8x128xf32>
    %142 = vector.shape_cast %138 : vector<8x128xf32> to vector<1x8x128xf32>
    tpu.vector_store %arg5[%139, %c0_34, %c0_35], %142 {strides = array<i32>} : memref<8x8x128xf32, #tpu.memory_space<vmem>>, vector<1x8x128xf32>,
    %c4_i32 = arith.constant 4 : i32
    %143 = arith.index_cast %c4_i32 : i32 to index
    %c0_36 = arith.constant 0 : index
    %c0_37 = arith.constant 0 : index
    %144 = vector.load %arg1[%143, %c0_36, %c0_37] : memref<8x8x512xf32, #tpu.memory_space<vmem>>, vector<1x8x512xf32>
    %145 = vector.shape_cast %144 : vector<1x8x512xf32> to vector<8x512xf32>
    %146 = vector.extract_strided_slice %138 {offsets = [0, 0], sizes = [8, 32], strides = [1, 1]} : vector<8x128xf32> to vector<8x32xf32>
    %cst_38 = arith.constant dense<0.000000e+00> : vector<8x512xf32>
    %147 = tpu.matmul %146, %0, %cst_38 {dimension_numbers = #tpu.dot_dimension_numbers<[1], [0], [0], [1], [0, 0, 1, 1], [], []>} : vector<8x32xf32>, vector<32x512xf32>, vector<8x512xf32> -> vector<8x512xf32>
    %148 = arith.addf %145, %147 : vector<8x512xf32>
    %149 = vector.extract_strided_slice %148 {offsets = [0, 0], sizes = [8, 128], strides = [1, 1]} : vector<8x512xf32> to vector<8x128xf32>
    %150 = arith.negf %149 : vector<8x128xf32>
    %151 = math.exp %150 : vector<8x128xf32>
    %cst_39 = arith.constant 1.000000e+00 : f32
    %152 = vector.broadcast %cst_39 : f32 to vector<8x128xf32>
    %153 = arith.addf %152, %151 : vector<8x128xf32>
    %154 = arith.divf %152, %153 : vector<8x128xf32>
    %155 = vector.extract_strided_slice %148 {offsets = [0, 128], sizes = [8, 128], strides = [1, 1]} : vector<8x512xf32> to vector<8x128xf32>
    %156 = arith.negf %155 : vector<8x128xf32>
    %157 = math.exp %156 : vector<8x128xf32>
    %cst_40 = arith.constant 1.000000e+00 : f32
    %158 = vector.broadcast %cst_40 : f32 to vector<8x128xf32>
    %159 = arith.addf %158, %157 : vector<8x128xf32>
    %160 = arith.divf %158, %159 : vector<8x128xf32>
    %161 = vector.extract_strided_slice %148 {offsets = [0, 256], sizes = [8, 128], strides = [1, 1]} : vector<8x512xf32> to vector<8x128xf32>
    %162 = math.tanh %161 : vector<8x128xf32>
    %163 = vector.extract_strided_slice %148 {offsets = [0, 384], sizes = [8, 128], strides = [1, 1]} : vector<8x512xf32> to vector<8x128xf32>
    %164 = arith.negf %163 : vector<8x128xf32>
    %165 = math.exp %164 : vector<8x128xf32>
    %cst_41 = arith.constant 1.000000e+00 : f32
    %166 = vector.broadcast %cst_41 : f32 to vector<8x128xf32>
    %167 = arith.addf %166, %165 : vector<8x128xf32>
    %168 = arith.divf %166, %167 : vector<8x128xf32>
    %169 = arith.mulf %160, %136 : vector<8x128xf32>
    %170 = arith.mulf %154, %162 : vector<8x128xf32>
    %171 = arith.addf %169, %170 : vector<8x128xf32>
    %172 = math.tanh %171 : vector<8x128xf32>
    %173 = arith.mulf %168, %172 : vector<8x128xf32>
    %174 = arith.index_cast %c4_i32 : i32 to index
    %c0_42 = arith.constant 0 : index
    %c0_43 = arith.constant 0 : index
    %175 = vector.load %arg5[%174, %c0_42, %c0_43] : memref<8x8x128xf32, #tpu.memory_space<vmem>>, vector<1x8x128xf32>
    %176 = vector.shape_cast %175 : vector<1x8x128xf32> to vector<8x128xf32>
    %177 = vector.shape_cast %173 : vector<8x128xf32> to vector<1x8x128xf32>
    tpu.vector_store %arg5[%174, %c0_42, %c0_43], %177 {strides = array<i32>} : memref<8x8x128xf32, #tpu.memory_space<vmem>>, vector<1x8x128xf32>,
    %c5_i32 = arith.constant 5 : i32
    %178 = arith.index_cast %c5_i32 : i32 to index
    %c0_44 = arith.constant 0 : index
    %c0_45 = arith.constant 0 : index
    %179 = vector.load %arg1[%178, %c0_44, %c0_45] : memref<8x8x512xf32, #tpu.memory_space<vmem>>, vector<1x8x512xf32>
    %180 = vector.shape_cast %179 : vector<1x8x512xf32> to vector<8x512xf32>
    %181 = vector.extract_strided_slice %173 {offsets = [0, 0], sizes = [8, 32], strides = [1, 1]} : vector<8x128xf32> to vector<8x32xf32>
    %cst_46 = arith.constant dense<0.000000e+00> : vector<8x512xf32>
    %182 = tpu.matmul %181, %0, %cst_46 {dimension_numbers = #tpu.dot_dimension_numbers<[1], [0], [0], [1], [0, 0, 1, 1], [], []>} : vector<8x32xf32>, vector<32x512xf32>, vector<8x512xf32> -> vector<8x512xf32>
    %183 = arith.addf %180, %182 : vector<8x512xf32>
    %184 = vector.extract_strided_slice %183 {offsets = [0, 0], sizes = [8, 128], strides = [1, 1]} : vector<8x512xf32> to vector<8x128xf32>
    %185 = arith.negf %184 : vector<8x128xf32>
    %186 = math.exp %185 : vector<8x128xf32>
    %cst_47 = arith.constant 1.000000e+00 : f32
    %187 = vector.broadcast %cst_47 : f32 to vector<8x128xf32>
    %188 = arith.addf %187, %186 : vector<8x128xf32>
    %189 = arith.divf %187, %188 : vector<8x128xf32>
    %190 = vector.extract_strided_slice %183 {offsets = [0, 128], sizes = [8, 128], strides = [1, 1]} : vector<8x512xf32> to vector<8x128xf32>
    %191 = arith.negf %190 : vector<8x128xf32>
    %192 = math.exp %191 : vector<8x128xf32>
    %cst_48 = arith.constant 1.000000e+00 : f32
    %193 = vector.broadcast %cst_48 : f32 to vector<8x128xf32>
    %194 = arith.addf %193, %192 : vector<8x128xf32>
    %195 = arith.divf %193, %194 : vector<8x128xf32>
    %196 = vector.extract_strided_slice %183 {offsets = [0, 256], sizes = [8, 128], strides = [1, 1]} : vector<8x512xf32> to vector<8x128xf32>
    %197 = math.tanh %196 : vector<8x128xf32>
    %198 = vector.extract_strided_slice %183 {offsets = [0, 384], sizes = [8, 128], strides = [1, 1]} : vector<8x512xf32> to vector<8x128xf32>
    %199 = arith.negf %198 : vector<8x128xf32>
    %200 = math.exp %199 : vector<8x128xf32>
    %cst_49 = arith.constant 1.000000e+00 : f32
    %201 = vector.broadcast %cst_49 : f32 to vector<8x128xf32>
    %202 = arith.addf %201, %200 : vector<8x128xf32>
    %203 = arith.divf %201, %202 : vector<8x128xf32>
    %204 = arith.mulf %195, %171 : vector<8x128xf32>
    %205 = arith.mulf %189, %197 : vector<8x128xf32>
    %206 = arith.addf %204, %205 : vector<8x128xf32>
    %207 = math.tanh %206 : vector<8x128xf32>
    %208 = arith.mulf %203, %207 : vector<8x128xf32>
    %209 = arith.index_cast %c5_i32 : i32 to index
    %c0_50 = arith.constant 0 : index
    %c0_51 = arith.constant 0 : index
    %210 = vector.load %arg5[%209, %c0_50, %c0_51] : memref<8x8x128xf32, #tpu.memory_space<vmem>>, vector<1x8x128xf32>
    %211 = vector.shape_cast %210 : vector<1x8x128xf32> to vector<8x128xf32>
    %212 = vector.shape_cast %208 : vector<8x128xf32> to vector<1x8x128xf32>
    tpu.vector_store %arg5[%209, %c0_50, %c0_51], %212 {strides = array<i32>} : memref<8x8x128xf32, #tpu.memory_space<vmem>>, vector<1x8x128xf32>,
    %c6_i32 = arith.constant 6 : i32
    %213 = arith.index_cast %c6_i32 : i32 to index
    %c0_52 = arith.constant 0 : index
    %c0_53 = arith.constant 0 : index
    %214 = vector.load %arg1[%213, %c0_52, %c0_53] : memref<8x8x512xf32, #tpu.memory_space<vmem>>, vector<1x8x512xf32>
    %215 = vector.shape_cast %214 : vector<1x8x512xf32> to vector<8x512xf32>
    %216 = vector.extract_strided_slice %208 {offsets = [0, 0], sizes = [8, 32], strides = [1, 1]} : vector<8x128xf32> to vector<8x32xf32>
    %cst_54 = arith.constant dense<0.000000e+00> : vector<8x512xf32>
    %217 = tpu.matmul %216, %0, %cst_54 {dimension_numbers = #tpu.dot_dimension_numbers<[1], [0], [0], [1], [0, 0, 1, 1], [], []>} : vector<8x32xf32>, vector<32x512xf32>, vector<8x512xf32> -> vector<8x512xf32>
    %218 = arith.addf %215, %217 : vector<8x512xf32>
    %219 = vector.extract_strided_slice %218 {offsets = [0, 0], sizes = [8, 128], strides = [1, 1]} : vector<8x512xf32> to vector<8x128xf32>
    %220 = arith.negf %219 : vector<8x128xf32>
    %221 = math.exp %220 : vector<8x128xf32>
    %cst_55 = arith.constant 1.000000e+00 : f32
    %222 = vector.broadcast %cst_55 : f32 to vector<8x128xf32>
    %223 = arith.addf %222, %221 : vector<8x128xf32>
    %224 = arith.divf %222, %223 : vector<8x128xf32>
    %225 = vector.extract_strided_slice %218 {offsets = [0, 128], sizes = [8, 128], strides = [1, 1]} : vector<8x512xf32> to vector<8x128xf32>
    %226 = arith.negf %225 : vector<8x128xf32>
    %227 = math.exp %226 : vector<8x128xf32>
    %cst_56 = arith.constant 1.000000e+00 : f32
    %228 = vector.broadcast %cst_56 : f32 to vector<8x128xf32>
    %229 = arith.addf %228, %227 : vector<8x128xf32>
    %230 = arith.divf %228, %229 : vector<8x128xf32>
    %231 = vector.extract_strided_slice %218 {offsets = [0, 256], sizes = [8, 128], strides = [1, 1]} : vector<8x512xf32> to vector<8x128xf32>
    %232 = math.tanh %231 : vector<8x128xf32>
    %233 = vector.extract_strided_slice %218 {offsets = [0, 384], sizes = [8, 128], strides = [1, 1]} : vector<8x512xf32> to vector<8x128xf32>
    %234 = arith.negf %233 : vector<8x128xf32>
    %235 = math.exp %234 : vector<8x128xf32>
    %cst_57 = arith.constant 1.000000e+00 : f32
    %236 = vector.broadcast %cst_57 : f32 to vector<8x128xf32>
    %237 = arith.addf %236, %235 : vector<8x128xf32>
    %238 = arith.divf %236, %237 : vector<8x128xf32>
    %239 = arith.mulf %230, %206 : vector<8x128xf32>
    %240 = arith.mulf %224, %232 : vector<8x128xf32>
    %241 = arith.addf %239, %240 : vector<8x128xf32>
    %242 = math.tanh %241 : vector<8x128xf32>
    %243 = arith.mulf %238, %242 : vector<8x128xf32>
    %244 = arith.index_cast %c6_i32 : i32 to index
    %c0_58 = arith.constant 0 : index
    %c0_59 = arith.constant 0 : index
    %245 = vector.load %arg5[%244, %c0_58, %c0_59] : memref<8x8x128xf32, #tpu.memory_space<vmem>>, vector<1x8x128xf32>
    %246 = vector.shape_cast %245 : vector<1x8x128xf32> to vector<8x128xf32>
    %247 = vector.shape_cast %243 : vector<8x128xf32> to vector<1x8x128xf32>
    tpu.vector_store %arg5[%244, %c0_58, %c0_59], %247 {strides = array<i32>} : memref<8x8x128xf32, #tpu.memory_space<vmem>>, vector<1x8x128xf32>,
    %c7_i32 = arith.constant 7 : i32
    %248 = arith.index_cast %c7_i32 : i32 to index
    %c0_60 = arith.constant 0 : index
    %c0_61 = arith.constant 0 : index
    %249 = vector.load %arg1[%248, %c0_60, %c0_61] : memref<8x8x512xf32, #tpu.memory_space<vmem>>, vector<1x8x512xf32>
    %250 = vector.shape_cast %249 : vector<1x8x512xf32> to vector<8x512xf32>
    %251 = vector.extract_strided_slice %243 {offsets = [0, 0], sizes = [8, 32], strides = [1, 1]} : vector<8x128xf32> to vector<8x32xf32>
    %cst_62 = arith.constant dense<0.000000e+00> : vector<8x512xf32>
    %252 = tpu.matmul %251, %0, %cst_62 {dimension_numbers = #tpu.dot_dimension_numbers<[1], [0], [0], [1], [0, 0, 1, 1], [], []>} : vector<8x32xf32>, vector<32x512xf32>, vector<8x512xf32> -> vector<8x512xf32>
    %253 = arith.addf %250, %252 : vector<8x512xf32>
    %254 = vector.extract_strided_slice %253 {offsets = [0, 0], sizes = [8, 128], strides = [1, 1]} : vector<8x512xf32> to vector<8x128xf32>
    %255 = arith.negf %254 : vector<8x128xf32>
    %256 = math.exp %255 : vector<8x128xf32>
    %cst_63 = arith.constant 1.000000e+00 : f32
    %257 = vector.broadcast %cst_63 : f32 to vector<8x128xf32>
    %258 = arith.addf %257, %256 : vector<8x128xf32>
    %259 = arith.divf %257, %258 : vector<8x128xf32>
    %260 = vector.extract_strided_slice %253 {offsets = [0, 128], sizes = [8, 128], strides = [1, 1]} : vector<8x512xf32> to vector<8x128xf32>
    %261 = arith.negf %260 : vector<8x128xf32>
    %262 = math.exp %261 : vector<8x128xf32>
    %cst_64 = arith.constant 1.000000e+00 : f32
    %263 = vector.broadcast %cst_64 : f32 to vector<8x128xf32>
    %264 = arith.addf %263, %262 : vector<8x128xf32>
    %265 = arith.divf %263, %264 : vector<8x128xf32>
    %266 = vector.extract_strided_slice %253 {offsets = [0, 256], sizes = [8, 128], strides = [1, 1]} : vector<8x512xf32> to vector<8x128xf32>
    %267 = math.tanh %266 : vector<8x128xf32>
    %268 = vector.extract_strided_slice %253 {offsets = [0, 384], sizes = [8, 128], strides = [1, 1]} : vector<8x512xf32> to vector<8x128xf32>
    %269 = arith.negf %268 : vector<8x128xf32>
    %270 = math.exp %269 : vector<8x128xf32>
    %cst_65 = arith.constant 1.000000e+00 : f32
    %271 = vector.broadcast %cst_65 : f32 to vector<8x128xf32>
    %272 = arith.addf %271, %270 : vector<8x128xf32>
    %273 = arith.divf %271, %272 : vector<8x128xf32>
    %274 = arith.mulf %265, %241 : vector<8x128xf32>
    %275 = arith.mulf %259, %267 : vector<8x128xf32>
    %276 = arith.addf %274, %275 : vector<8x128xf32>
    %277 = math.tanh %276 : vector<8x128xf32>
    %278 = arith.mulf %273, %277 : vector<8x128xf32>
    %279 = arith.index_cast %c7_i32 : i32 to index
    %c0_66 = arith.constant 0 : index
    %c0_67 = arith.constant 0 : index
    %280 = vector.load %arg5[%279, %c0_66, %c0_67] : memref<8x8x128xf32, #tpu.memory_space<vmem>>, vector<1x8x128xf32>
    %281 = vector.shape_cast %280 : vector<1x8x128xf32> to vector<8x128xf32>
    %282 = vector.shape_cast %278 : vector<8x128xf32> to vector<1x8x128xf32>
    tpu.vector_store %arg5[%279, %c0_66, %c0_67], %282 {strides = array<i32>} : memref<8x8x128xf32, #tpu.memory_space<vmem>>, vector<1x8x128xf32>,
    %c8_i32 = arith.constant 8 : i32
    %c0_68 = arith.constant 0 : index
    %c0_69 = arith.constant 0 : index
    %283 = vector.load %arg6[%c0_68, %c0_69] : memref<8x128xf32, #tpu.memory_space<vmem>>, vector<8x128xf32>
    tpu.vector_store %arg6[%c0_68, %c0_69], %278 {strides = array<i32>} : memref<8x128xf32, #tpu.memory_space<vmem>>, vector<8x128xf32>,
    %c0_70 = arith.constant 0 : index
    %c0_71 = arith.constant 0 : index
    %284 = vector.load %arg7[%c0_70, %c0_71] : memref<8x128xf32, #tpu.memory_space<vmem>>, vector<8x128xf32>
    tpu.vector_store %arg7[%c0_70, %c0_71], %276 {strides = array<i32>} : memref<8x128xf32, #tpu.memory_space<vmem>>, vector<8x128xf32>,
    return
  }
  func.func @transform_0(%arg0: i32) -> (i32, i32, i32) {
    %c0_i32 = arith.constant 0 : i32
    %c0_i32_0 = arith.constant 0 : i32
    %c0_i32_1 = arith.constant 0 : i32
    return %c0_i32, %arg0, %c0_i32_0 : i32, i32, i32
  }
  func.func @transform_1(%arg0: i32) -> (i32, i32) {
    %c0_i32 = arith.constant 0 : i32
    %c0_i32_0 = arith.constant 0 : i32
    return %arg0, %c0_i32 : i32, i32
  }
  func.func @transform_2(%arg0: i32) -> (i32, i32) {
    %c0_i32 = arith.constant 0 : i32
    %c0_i32_0 = arith.constant 0 : i32
    return %arg0, %c0_i32 : i32, i32
  }
  func.func @transform_3(%arg0: i32) -> (i32, i32) {
    %c0_i32 = arith.constant 0 : i32
    %c0_i32_0 = arith.constant 0 : i32
    %c0_i32_1 = arith.constant 0 : i32
    return %c0_i32, %c0_i32_0 : i32, i32
  }
  func.func @transform_4(%arg0: i32) -> (i32, i32, i32) {
    %c0_i32 = arith.constant 0 : i32
    %c0_i32_0 = arith.constant 0 : i32
    %c0_i32_1 = arith.constant 0 : i32
    return %c0_i32, %arg0, %c0_i32_0 : i32, i32, i32
  }
  func.func @transform_5(%arg0: i32) -> (i32, i32) {
    %c0_i32 = arith.constant 0 : i32
    %c0_i32_0 = arith.constant 0 : i32
    return %arg0, %c0_i32 : i32, i32
  }
  func.func @transform_6(%arg0: i32) -> (i32, i32) {
    %c0_i32 = arith.constant 0 : i32
    %c0_i32_0 = arith.constant 0 : i32
    return %arg0, %c0_i32 : i32, i32
  }
}

</mosaic_0001>

<llo_original>
// kernel: tpu_custom_call.1
$region0: #{tpu_custom_call.1}
  #allocation0 [shape = 'u32[]', space=smem, size = 0x4, offset = 0x4, fixed_abs, tag = 'smem constant byte address 0x4 - core index']
  #allocation1 [shape = 'u32[144,128]{1,0:T(1,128)}', space=vmem, size = 0x12000, scoped, tag = 'internal scratch']
  %s0 = inlined_call_operand.hbm [shape: f32[8,8,512], index: 0, kind: input, shape index: {}]
  %s1 = inlined_call_operand.hbm [shape: f32[8,128], index: 1, kind: input, shape index: {}]
  %s2 = inlined_call_operand.hbm [shape: f32[8,128], index: 2, kind: input, shape index: {}]
  %s3 = inlined_call_operand.hbm [shape: f32[32,512], index: 3, kind: input, shape index: {}]
  %s4 = inlined_call_operand.hbm [shape: f32[8,8,128], index: 4, kind: output, shape index: {0}]
  %s5 = inlined_call_operand.hbm [shape: f32[8,128], index: 5, kind: output, shape index: {1}]
  %s6 = inlined_call_operand.hbm [shape: f32[8,128], index: 6, kind: output, shape index: {2}]
  %7 = xla_tuple %s4, %s5, %s6
  %s8 = sld [smem:[#allocation0]]
  $region58: #{tpu_custom_call.1} parent=0
    _
  %s10 = ssub.s32 1, %s8
  %s11 = scalar_select 0, %s10, %s8
  $region1: #{tpu_custom_call.1} parent=0
    #allocation2 [shape = 'u8[131072]{0}', space=vmem, size = 0x20000, scoped, tag = 'input window, operand 0, single buffered']
    #allocation3 [shape = 's32[1]{0}', space=sflag, size = 0x4, scoped, tag = 'scoped memory for tpu_custom_call.1']
    #allocation4 [shape = 's32[1]{0}', space=sflag, size = 0x4, scoped, tag = 'scoped memory for tpu_custom_call.1']
    #allocation5 [shape = 'u8[4096]{0}', space=vmem, size = 0x1000, scoped, tag = 'input window, operand 1, single buffered']
    #allocation6 [shape = 's32[1]{0}', space=sflag, size = 0x4, scoped, tag = 'scoped memory for tpu_custom_call.1']
    #allocation7 [shape = 'u8[4096]{0}', space=vmem, size = 0x1000, scoped, tag = 'input window, operand 2, single buffered']
    #allocation8 [shape = 'u8[65536]{0}', space=vmem, size = 0x10000, scoped, tag = 'input window, operand 3, single buffered']
    #allocation9 [shape = 's32[1]{0}', space=sflag, size = 0x4, scoped, tag = 'scoped memory for tpu_custom_call.1']
    #allocation10 [shape = 'u8[32768]{0}', space=vmem, size = 0x8000, scoped, tag = 'output window, operand 0, single buffered']
    #allocation11 [shape = 'u8[4096]{0}', space=vmem, size = 0x1000, scoped, tag = 'output window, operand 1, single buffered']
    #allocation12 [shape = 's32[1]{0}', space=sflag, size = 0x4, scoped, tag = 'scoped memory for tpu_custom_call.1']
    #allocation13 [shape = 'u8[4096]{0}', space=vmem, size = 0x1000, scoped, tag = 'output window, operand 2, single buffered']
    %12 = vsyncpa [#allocation3], 0
    %13 = vsyncpa [#allocation6], 0
    %14 = vsyncpa [#allocation9], 0
    %15 = vsyncpa [#allocation4], 0
    %16 = vsyncpa [#allocation12], 0
    // Predicated region
    $region2: #{tpu_custom_call.1} parent=1 // pred_check
      _
    $region3: #{tpu_custom_call.1} parent=1 // pred_check_branch
      %18 = sbr.rel (0) target = $region5
    $region4: #{tpu_custom_call.1} parent=1 // pred_region
      %s20 = ssub.s32 4096, 4096
      %21 = vsyncadd [#allocation3], %s20
      %s22 = sshll.u32 [#allocation2], 4
      %s23 = int_to_ptr.vmem [resolvable:$true] %s22
      %28 = dma.hbm_to_vmem [thread:$0]  %s0, 4096, %s23, [#allocation3], 512, 512, 32
    $region5: #{tpu_custom_call.1} parent=1 // pred_fallthru
      _
    // Predicated region
    $region6: #{tpu_custom_call.1} parent=1 // pred_check
      _
    $region7: #{tpu_custom_call.1} parent=1 // pred_check_branch
      %30 = sbr.rel (0) target = $region9
    $region8: #{tpu_custom_call.1} parent=1 // pred_region
      %s32 = ssub.s32 128, 128
      %33 = vsyncadd [#allocation6], %s32
      %s35 = sshll.u32 [#allocation5], 4
      %s36 = int_to_ptr.vmem [resolvable:$true] %s35
      %38 = dma.hbm_to_vmem [thread:$0]  %s1, 128, %s36, [#allocation6]
    $region9: #{tpu_custom_call.1} parent=1 // pred_fallthru
      _
    // Predicated region
    $region10: #{tpu_custom_call.1} parent=1 // pred_check
      _
    $region11: #{tpu_custom_call.1} parent=1 // pred_check_branch
      %40 = sbr.rel (0) target = $region13
    $region12: #{tpu_custom_call.1} parent=1 // pred_region
      %s42 = ssub.s32 128, 128
      %43 = vsyncadd [#allocation6], %s42
      %s45 = sshll.u32 [#allocation7], 4
      %s46 = int_to_ptr.vmem [resolvable:$true] %s45
      %48 = dma.hbm_to_vmem [thread:$0]  %s2, 128, %s46, [#allocation6]
    $region13: #{tpu_custom_call.1} parent=1 // pred_fallthru
      _
    // Predicated region
    $region14: #{tpu_custom_call.1} parent=1 // pred_check
      _
    $region15: #{tpu_custom_call.1} parent=1 // pred_check_branch
      %50 = sbr.rel (0) target = $region17
    $region16: #{tpu_custom_call.1} parent=1 // pred_region
      %s52 = ssub.s32 2048, 2048
      %53 = vsyncadd [#allocation9], %s52
      %s54 = sshll.u32 [#allocation8], 4
      %s55 = int_to_ptr.vmem [resolvable:$true] %s54
      %60 = dma.hbm_to_vmem [thread:$0]  %s3, 2048, %s55, [#allocation9], 512, 512, 32
    $region17: #{tpu_custom_call.1} parent=1 // pred_fallthru
      _
    // Predicated region
    $region18: #{tpu_custom_call.1} parent=1 // pred_check
      _
    $region19: #{tpu_custom_call.1} parent=1 // pred_check_branch
      %62 = sbr.rel (0) target = $region21
    $region20: #{tpu_custom_call.1} parent=1 // pred_region
      %63 = dma.done [#allocation3], 4096
    $region21: #{tpu_custom_call.1} parent=1 // pred_fallthru
      _
    // Predicated region
    $region22: #{tpu_custom_call.1} parent=1 // pred_check
      _
    $region23: #{tpu_custom_call.1} parent=1 // pred_check_branch
      %65 = sbr.rel (0) target = $region25
    $region24: #{tpu_custom_call.1} parent=1 // pred_region
      %66 = dma.done [#allocation6], 128
    $region25: #{tpu_custom_call.1} parent=1 // pred_fallthru
      _
    // Predicated region
    $region26: #{tpu_custom_call.1} parent=1 // pred_check
      _
    $region27: #{tpu_custom_call.1} parent=1 // pred_check_branch
      %68 = sbr.rel (0) target = $region29
    $region28: #{tpu_custom_call.1} parent=1 // pred_region
      %69 = dma.done [#allocation6], 128
    $region29: #{tpu_custom_call.1} parent=1 // pred_fallthru
      _
    // Predicated region
    $region30: #{tpu_custom_call.1} parent=1 // pred_check
      _
    $region31: #{tpu_custom_call.1} parent=1 // pred_check_branch
      %71 = sbr.rel (0) target = $region33
    $region32: #{tpu_custom_call.1} parent=1 // pred_region
      %72 = dma.done [#allocation9], 2048
    $region33: #{tpu_custom_call.1} parent=1 // pred_fallthru
      _
    %v73 = vld [vmem:[#allocation8] sm:$0xff]
    %v74 = vld [vmem:[#allocation8 + $0x8] sm:$0xff]
    %v75 = vld [vmem:[#allocation8 + $0x10] sm:$0xff]
    %v76 = vld [vmem:[#allocation8 + $0x18] sm:$0xff]
    %v77 = vld [vmem:[#allocation8 + $0x20] sm:$0xff]
    %v78 = vld [vmem:[#allocation8 + $0x28] sm:$0xff]
    %v79 = vld [vmem:[#allocation8 + $0x30] sm:$0xff]
    %v80 = vld [vmem:[#allocation8 + $0x38] sm:$0xff]
    %v81 = vld [vmem:[#allocation8 + $0x40] sm:$0xff]
    %v82 = vld [vmem:[#allocation8 + $0x48] sm:$0xff]
    %v83 = vld [vmem:[#allocation8 + $0x50] sm:$0xff]
    %v84 = vld [vmem:[#allocation8 + $0x58] sm:$0xff]
    %v85 = vld [vmem:[#allocation8 + $0x60] sm:$0xff]
    %v86 = vld [vmem:[#allocation8 + $0x68] sm:$0xff]
    %v87 = vld [vmem:[#allocation8 + $0x70] sm:$0xff]
    %v88 = vld [vmem:[#allocation8 + $0x78] sm:$0xff]
    %v89 = vld [vmem:[#allocation5] sm:$0xff]
    %v90 = vld [vmem:[#allocation7] sm:$0xff]
    %v91 = vld [vmem:[#allocation2] sm:$0xff]
    %v92 = vld [vmem:[#allocation2 + $0x8] sm:$0xff]
    %v93 = vld [vmem:[#allocation2 + $0x10] sm:$0xff]
    %v94 = vld [vmem:[#allocation2 + $0x18] sm:$0xff]
    %vm95 = vcmask 261120
    %v97 = vsel %vm95, %v89, 0
    %99 = vmatprep.subr.mxu0 %v74
    %100 = vmatpush1.msra.mxu0 %v73
    %101 = vmatprep.subr.mxu0 %v78
    %102 = vmatpush1.msra.mxu0 %v77
    %103 = vmatprep.subr.mxu0 %v82
    %104 = vmatpush1.msra.mxu0 %v81
    %105 = vmatprep.subr.mxu0 %v86
    %106 = vmatpush1.msra.mxu0 %v85
    %107 = vmatprep.subr.mxu0 0.0
    %108 = vmatpush1.msra.mxu0 0.0
    %109 = vmatprep.subr.mxu0 0.0
    %110 = vmatpush1.msra.mxu0 0.0
    %111 = vmatprep.subr.mxu0 0.0
    %112 = vmatpush1.msra.mxu0 0.0
    %113 = vmatprep.subr.mxu0 0.0
    %114 = vmatpush1.msra.mxu0 0.0
    %115 = vmatprep.subr.mxu0 0.0
    %116 = vmatpush1.msra.mxu0 0.0
    %117 = vmatprep.subr.mxu0 0.0
    %118 = vmatpush1.msra.mxu0 0.0
    %119 = vmatprep.subr.mxu0 0.0
    %120 = vmatpush1.msra.mxu0 0.0
    %121 = vmatprep.subr.mxu0 0.0
    %122 = vmatpush1.msra.mxu0 0.0
    %123 = vmatprep.subr.mxu0 0.0
    %124 = vmatpush1.msra.mxu0 0.0
    %125 = vmatprep.subr.mxu0 0.0
    %126 = vmatpush1.msra.mxu0 0.0
    %127 = vmatprep.subr.mxu0 0.0
    %128 = vmatpush1.msra.mxu0 0.0
    %129 = vmatprep.subr.mxu0 0.0
    %130 = vmatpush1.msra.mxu0 0.0
    %131 = vmatprep.subr.mxu0 0.0
    %132 = vmatpush1.msra.mxu0 0.0
    %133 = vmatprep.subr.mxu0 0.0
    %134 = vmatpush1.msra.mxu0 0.0
    %135 = vmatprep.subr.mxu0 0.0
    %136 = vmatpush1.msra.mxu0 0.0
    %137 = vmatprep.subr.mxu0 0.0
    %138 = vmatpush1.msra.mxu0 0.0
    %139 = vmatprep.subr.mxu0 0.0
    %140 = vmatpush1.msra.mxu0 0.0
    %141 = vmatprep.subr.mxu0 0.0
    %142 = vmatpush1.msra.mxu0 0.0
    %143 = vmatprep.subr.mxu0 0.0
    %144 = vmatpush1.msra.mxu0 0.0
    %145 = vmatprep.subr.mxu0 0.0
    %146 = vmatpush1.msra.mxu0 0.0
    %147 = vmatprep.subr.mxu0 0.0
    %148 = vmatpush1.msra.mxu0 0.0
    %149 = vmatprep.subr.mxu0 0.0
    %150 = vmatpush1.msra.mxu0 0.0
    %151 = vmatprep.subr.mxu0 0.0
    %152 = vmatpush1.msra.mxu0 0.0
    %153 = vmatprep.subr.mxu0 0.0
    %154 = vmatpush1.msra.mxu0 0.0
    %155 = vmatprep.subr.mxu0 0.0
    %156 = vmatpush1.msra.mxu0 0.0
    %157 = vmatprep.subr.mxu0 0.0
    %158 = vmatpush1.msra.mxu0 0.0
    %159 = vmatprep.subr.mxu0 0.0
    %160 = vmatpush1.msra.mxu0 0.0
    %161 = vmatprep.subr.mxu0 0.0
    %162 = vmatpush1.msra.mxu0 0.0
    %163 = vmatprep.mubr.f32.mxu0 0.0
    %164 = vmatmul.mubr.f32.gmra.mrb[0].mxu0 %v97
    %v165 = vpop.f32.mrb[0].mxu0
    %v166 = vadd.f32 0.0, %v165
    %v167 = vpop.f32.mrb[0].mxu0
    %v168 = vadd.f32 0.0, %v167
    %169 = vdwg.mxu0
    %170 = vmatprep.subr.mxu0 %v76
    %171 = vmatpush1.msra.mxu0 %v75
    %172 = vmatprep.subr.mxu0 %v80
    %173 = vmatpush1.msra.mxu0 %v79
    %174 = vmatprep.subr.mxu0 %v84
    %175 = vmatpush1.msra.mxu0 %v83
    %176 = vmatprep.subr.mxu0 %v88
    %177 = vmatpush1.msra.mxu0 %v87
    %178 = vmatprep.subr.mxu0 0.0
    %179 = vmatpush1.msra.mxu0 0.0
    %180 = vmatprep.subr.mxu0 0.0
    %181 = vmatpush1.msra.mxu0 0.0
    %182 = vmatprep.subr.mxu0 0.0
    %183 = vmatpush1.msra.mxu0 0.0
    %184 = vmatprep.subr.mxu0 0.0
    %185 = vmatpush1.msra.mxu0 0.0
    %186 = vmatprep.subr.mxu0 0.0
    %187 = vmatpush1.msra.mxu0 0.0
    %188 = vmatprep.subr.mxu0 0.0
    %189 = vmatpush1.msra.mxu0 0.0
    %190 = vmatprep.subr.mxu0 0.0
    %191 = vmatpush1.msra.mxu0 0.0
    %192 = vmatprep.subr.mxu0 0.0
    %193 = vmatpush1.msra.mxu0 0.0
    %194 = vmatprep.subr.mxu0 0.0
    %195 = vmatpush1.msra.mxu0 0.0
    %196 = vmatprep.subr.mxu0 0.0
    %197 = vmatpush1.msra.mxu0 0.0
    %198 = vmatprep.subr.mxu0 0.0
    %199 = vmatpush1.msra.mxu0 0.0
    %200 = vmatprep.subr.mxu0 0.0
    %201 = vmatpush1.msra.mxu0 0.0
    %202 = vmatprep.subr.mxu0 0.0
    %203 = vmatpush1.msra.mxu0 0.0
    %204 = vmatprep.subr.mxu0 0.0
    %205 = vmatpush1.msra.mxu0 0.0
    %206 = vmatprep.subr.mxu0 0.0
    %207 = vmatpush1.msra.mxu0 0.0
    %208 = vmatprep.subr.mxu0 0.0
    %209 = vmatpush1.msra.mxu0 0.0
    %210 = vmatprep.subr.mxu0 0.0
    %211 = vmatpush1.msra.mxu0 0.0
    %212 = vmatprep.subr.mxu0 0.0
    %213 = vmatpush1.msra.mxu0 0.0
    %214 = vmatprep.subr.mxu0 0.0
    %215 = vmatpush1.msra.mxu0 0.0
    %216 = vmatprep.subr.mxu0 0.0
    %217 = vmatpush1.msra.mxu0 0.0
    %218 = vmatprep.subr.mxu0 0.0
    %219 = vmatpush1.msra.mxu0 0.0
    %220 = vmatprep.subr.mxu0 0.0
    %221 = vmatpush1.msra.mxu0 0.0
    %222 = vmatprep.subr.mxu0 0.0
    %223 = vmatpush1.msra.mxu0 0.0
    %224 = vmatprep.subr.mxu0 0.0
    %225 = vmatpush1.msra.mxu0 0.0
    %226 = vmatprep.subr.mxu0 0.0
    %227 = vmatpush1.msra.mxu0 0.0
    %228 = vmatprep.subr.mxu0 0.0
    %229 = vmatpush1.msra.mxu0 0.0
    %230 = vmatprep.subr.mxu0 0.0
    %231 = vmatpush1.msra.mxu0 0.0
    %232 = vmatprep.subr.mxu0 0.0
    %233 = vmatpush1.msra.mxu0 0.0
    %234 = vmatprep.mubr.f32.mxu0 0.0
    %235 = vmatmul.mubr.f32.gmra.mrb[0].mxu0 %v97
    %v236 = vpop.f32.mrb[0].mxu0
    %v237 = vadd.f32 0.0, %v236
    %v238 = vpop.f32.mrb[0].mxu0
    %v239 = vadd.f32 0.0, %v238
    %240 = vdwg.mxu0
    %v241 = vadd.f32 %v91, %v166
    %v242 = vadd.f32 %v92, %v168
    %v243 = vadd.f32 %v93, %v237
    %v244 = vadd.f32 %v94, %v239
    %v245 = vxor.u32 %v241, 2147483648
    %v246 = vmul.f32 %v245, 1.442695
    %v247 = vpow.pop %v246
    %v248 = vadd.f32 %v247, 1.0
    %v249 = vrcp.pop %v248
    %v250 = vmul.f32 1.0, %v249
    %v251 = vxor.u32 %v242, 2147483648
    %v252 = vmul.f32 %v251, 1.442695
    %v253 = vpow.pop %v252
    %v254 = vadd.f32 %v253, 1.0
    %v255 = vrcp.pop %v254
    %v256 = vmul.f32 1.0, %v255
    %v257 = vtanh.pop %v243
    %v258 = vxor.u32 %v244, 2147483648
    %v259 = vmul.f32 %v258, 1.442695
    %v260 = vpow.pop %v259
    %v261 = vadd.f32 %v260, 1.0
    %v262 = vrcp.pop %v261
    %v263 = vmul.f32 1.0, %v262
    %v264 = vmul.f32 %v256, %v90
    %v265 = vmul.f32 %v250, %v257
    %v266 = vadd.f32 %v264, %v265
    %v267 = vtanh.pop %v266
    %v268 = vmul.f32 %v263, %v267
    %269 = vst [vmem:[#allocation10] sm:$0xff] %v268
    %s270 = scalar_lea.vmem [#allocation2], 32
    %v271 = vld [vmem:[%s270] sm:$0xff]
    %v272 = vld [vmem:[%s270 + $0x8] sm:$0xff]
    %v273 = vld [vmem:[%s270 + $0x10] sm:$0xff]
    %v274 = vld [vmem:[%s270 + $0x18] sm:$0xff]
    %v276 = vsel %vm95, %v268, 0
    %278 = vmatprep.subr.mxu0 %v74
    %279 = vmatpush1.msra.mxu0 %v73
    %280 = vmatprep.subr.mxu0 %v78
    %281 = vmatpush1.msra.mxu0 %v77
    %282 = vmatprep.subr.mxu0 %v82
    %283 = vmatpush1.msra.mxu0 %v81
    %284 = vmatprep.subr.mxu0 %v86
    %285 = vmatpush1.msra.mxu0 %v85
    %286 = vmatprep.subr.mxu0 0.0
    %287 = vmatpush1.msra.mxu0 0.0
    %288 = vmatprep.subr.mxu0 0.0
    %289 = vmatpush1.msra.mxu0 0.0
    %290 = vmatprep.subr.mxu0 0.0
    %291 = vmatpush1.msra.mxu0 0.0
    %292 = vmatprep.subr.mxu0 0.0
    %293 = vmatpush1.msra.mxu0 0.0
    %294 = vmatprep.subr.mxu0 0.0
    %295 = vmatpush1.msra.mxu0 0.0
    %296 = vmatprep.subr.mxu0 0.0
    %297 = vmatpush1.msra.mxu0 0.0
    %298 = vmatprep.subr.mxu0 0.0
    %299 = vmatpush1.msra.mxu0 0.0
    %300 = vmatprep.subr.mxu0 0.0
    %301 = vmatpush1.msra.mxu0 0.0
    %302 = vmatprep.subr.mxu0 0.0
    %303 = vmatpush1.msra.mxu0 0.0
    %304 = vmatprep.subr.mxu0 0.0
    %305 = vmatpush1.msra.mxu0 0.0
    %306 = vmatprep.subr.mxu0 0.0
    %307 = vmatpush1.msra.mxu0 0.0
    %308 = vmatprep.subr.mxu0 0.0
    %309 = vmatpush1.msra.mxu0 0.0
    %310 = vmatprep.subr.mxu0 0.0
    %311 = vmatpush1.msra.mxu0 0.0
    %312 = vmatprep.subr.mxu0 0.0
    %313 = vmatpush1.msra.mxu0 0.0
    %314 = vmatprep.subr.mxu0 0.0
    %315 = vmatpush1.msra.mxu0 0.0
    %316 = vmatprep.subr.mxu0 0.0
    %317 = vmatpush1.msra.mxu0 0.0
    %318 = vmatprep.subr.mxu0 0.0
    %319 = vmatpush1.msra.mxu0 0.0
    %320 = vmatprep.subr.mxu0 0.0
    %321 = vmatpush1.msra.mxu0 0.0
    %322 = vmatprep.subr.mxu0 0.0
    %323 = vmatpush1.msra.mxu0 0.0
    %324 = vmatprep.subr.mxu0 0.0
    %325 = vmatpush1.msra.mxu0 0.0
    %326 = vmatprep.subr.mxu0 0.0
    %327 = vmatpush1.msra.mxu0 0.0
    %328 = vmatprep.subr.mxu0 0.0
    %329 = vmatpush1.msra.mxu0 0.0
    %330 = vmatprep.subr.mxu0 0.0
    %331 = vmatpush1.msra.mxu0 0.0
    %332 = vmatprep.subr.mxu0 0.0
    %333 = vmatpush1.msra.mxu0 0.0
    %334 = vmatprep.subr.mxu0 0.0
    %335 = vmatpush1.msra.mxu0 0.0
    %336 = vmatprep.subr.mxu0 0.0
    %337 = vmatpush1.msra.mxu0 0.0
    %338 = vmatprep.subr.mxu0 0.0
    %339 = vmatpush1.msra.mxu0 0.0
    %340 = vmatprep.subr.mxu0 0.0
    %341 = vmatpush1.msra.mxu0 0.0
    %342 = vmatprep.mubr.f32.mxu0 0.0
    %343 = vmatmul.mubr.f32.gmra.mrb[0].mxu0 %v276
    %v344 = vpop.f32.mrb[0].mxu0
    %v345 = vadd.f32 0.0, %v344
    %v346 = vpop.f32.mrb[0].mxu0
    %v347 = vadd.f32 0.0, %v346
    %348 = vdwg.mxu0
    %349 = vmatprep.subr.mxu0 %v76
    %350 = vmatpush1.msra.mxu0 %v75
    %351 = vmatprep.subr.mxu0 %v80
    %352 = vmatpush1.msra.mxu0 %v79
    %353 = vmatprep.subr.mxu0 %v84
    %354 = vmatpush1.msra.mxu0 %v83
    %355 = vmatprep.subr.mxu0 %v88
    %356 = vmatpush1.msra.mxu0 %v87
    %357 = vmatprep.subr.mxu0 0.0
    %358 = vmatpush1.msra.mxu0 0.0
    %359 = vmatprep.subr.mxu0 0.0
    %360 = vmatpush1.msra.mxu0 0.0
    %361 = vmatprep.subr.mxu0 0.0
    %362 = vmatpush1.msra.mxu0 0.0
    %363 = vmatprep.subr.mxu0 0.0
    %364 = vmatpush1.msra.mxu0 0.0
    %365 = vmatprep.subr.mxu0 0.0
    %366 = vmatpush1.msra.mxu0 0.0
    %367 = vmatprep.subr.mxu0 0.0
    %368 = vmatpush1.msra.mxu0 0.0
    %369 = vmatprep.subr.mxu0 0.0
    %370 = vmatpush1.msra.mxu0 0.0
    %371 = vmatprep.subr.mxu0 0.0
    %372 = vmatpush1.msra.mxu0 0.0
    %373 = vmatprep.subr.mxu0 0.0
    %374 = vmatpush1.msra.mxu0 0.0
    %375 = vmatprep.subr.mxu0 0.0
    %376 = vmatpush1.msra.mxu0 0.0
    %377 = vmatprep.subr.mxu0 0.0
    %378 = vmatpush1.msra.mxu0 0.0
    %379 = vmatprep.subr.mxu0 0.0
    %380 = vmatpush1.msra.mxu0 0.0
    %381 = vmatprep.subr.mxu0 0.0
    %382 = vmatpush1.msra.mxu0 0.0
    %383 = vmatprep.subr.mxu0 0.0
    %384 = vmatpush1.msra.mxu0 0.0
    %385 = vmatprep.subr.mxu0 0.0
    %386 = vmatpush1.msra.mxu0 0.0
    %387 = vmatprep.subr.mxu0 0.0
    %388 = vmatpush1.msra.mxu0 0.0
    %389 = vmatprep.subr.mxu0 0.0
    %390 = vmatpush1.msra.mxu0 0.0
    %391 = vmatprep.subr.mxu0 0.0
    %392 = vmatpush1.msra.mxu0 0.0
    %393 = vmatprep.subr.mxu0 0.0
    %394 = vmatpush1.msra.mxu0 0.0
    %395 = vmatprep.subr.mxu0 0.0
    %396 = vmatpush1.msra.mxu0 0.0
    %397 = vmatprep.subr.mxu0 0.0
    %398 = vmatpush1.msra.mxu0 0.0
    %399 = vmatprep.subr.mxu0 0.0
    %400 = vmatpush1.msra.mxu0 0.0
    %401 = vmatprep.subr.mxu0 0.0
    %402 = vmatpush1.msra.mxu0 0.0
    %403 = vmatprep.subr.mxu0 0.0
    %404 = vmatpush1.msra.mxu0 0.0
    %405 = vmatprep.subr.mxu0 0.0
    %406 = vmatpush1.msra.mxu0 0.0
    %407 = vmatprep.subr.mxu0 0.0
    %408 = vmatpush1.msra.mxu0 0.0
    %409 = vmatprep.subr.mxu0 0.0
    %410 = vmatpush1.msra.mxu0 0.0
    %411 = vmatprep.subr.mxu0 0.0
    %412 = vmatpush1.msra.mxu0 0.0
    %413 = vmatprep.mubr.f32.mxu0 0.0
    %414 = vmatmul.mubr.f32.gmra.mrb[0].mxu0 %v276
    %v415 = vpop.f32.mrb[0].mxu0
    %v416 = vadd.f32 0.0, %v415
    %v417 = vpop.f32.mrb[0].mxu0
    %v418 = vadd.f32 0.0, %v417
    %419 = vdwg.mxu0
    %v420 = vadd.f32 %v271, %v345
    %v421 = vadd.f32 %v272, %v347
    %v422 = vadd.f32 %v273, %v416
    %v423 = vadd.f32 %v274, %v418
    %v424 = vxor.u32 %v420, 2147483648
    %v425 = vmul.f32 %v424, 1.442695
    %v426 = vpow.pop %v425
    %v427 = vadd.f32 %v426, 1.0
    %v428 = vrcp.pop %v427
    %v429 = vmul.f32 1.0, %v428
    %v430 = vxor.u32 %v421, 2147483648
    %v431 = vmul.f32 %v430, 1.442695
    %v432 = vpow.pop %v431
    %v433 = vadd.f32 %v432, 1.0
    %v434 = vrcp.pop %v433
    %v435 = vmul.f32 1.0, %v434
    %v436 = vtanh.pop %v422
    %v437 = vxor.u32 %v423, 2147483648
    %v438 = vmul.f32 %v437, 1.442695
    %v439 = vpow.pop %v438
    %v440 = vadd.f32 %v439, 1.0
    %v441 = vrcp.pop %v440
    %v442 = vmul.f32 1.0, %v441
    %v443 = vmul.f32 %v435, %v266
    %v444 = vmul.f32 %v429, %v436
    %v445 = vadd.f32 %v443, %v444
    %v446 = vtanh.pop %v445
    %v447 = vmul.f32 %v442, %v446
    %s448 = scalar_lea.vmem [#allocation10], 8
    %449 = vst [vmem:[%s448] sm:$0xff] %v447
    %s450 = scalar_lea.vmem [#allocation2], 64
    %v451 = vld [vmem:[%s450] sm:$0xff]
    %v452 = vld [vmem:[%s450 + $0x8] sm:$0xff]
    %v453 = vld [vmem:[%s450 + $0x10] sm:$0xff]
    %v454 = vld [vmem:[%s450 + $0x18] sm:$0xff]
    %v456 = vsel %vm95, %v447, 0
    %458 = vmatprep.subr.mxu0 %v74
    %459 = vmatpush1.msra.mxu0 %v73
    %460 = vmatprep.subr.mxu0 %v78
    %461 = vmatpush1.msra.mxu0 %v77
    %462 = vmatprep.subr.mxu0 %v82
    %463 = vmatpush1.msra.mxu0 %v81
    %464 = vmatprep.subr.mxu0 %v86
    %465 = vmatpush1.msra.mxu0 %v85
    %466 = vmatprep.subr.mxu0 0.0
    %467 = vmatpush1.msra.mxu0 0.0
    %468 = vmatprep.subr.mxu0 0.0
    %469 = vmatpush1.msra.mxu0 0.0
    %470 = vmatprep.subr.mxu0 0.0
    %471 = vmatpush1.msra.mxu0 0.0
    %472 = vmatprep.subr.mxu0 0.0
    %473 = vmatpush1.msra.mxu0 0.0
    %474 = vmatprep.subr.mxu0 0.0
    %475 = vmatpush1.msra.mxu0 0.0
    %476 = vmatprep.subr.mxu0 0.0
    %477 = vmatpush1.msra.mxu0 0.0
    %478 = vmatprep.subr.mxu0 0.0
    %479 = vmatpush1.msra.mxu0 0.0
    %480 = vmatprep.subr.mxu0 0.0
    %481 = vmatpush1.msra.mxu0 0.0
    %482 = vmatprep.subr.mxu0 0.0
    %483 = vmatpush1.msra.mxu0 0.0
    %484 = vmatprep.subr.mxu0 0.0
    %485 = vmatpush1.msra.mxu0 0.0
    %486 = vmatprep.subr.mxu0 0.0
    %487 = vmatpush1.msra.mxu0 0.0
    %488 = vmatprep.subr.mxu0 0.0
    %489 = vmatpush1.msra.mxu0 0.0
    %490 = vmatprep.subr.mxu0 0.0
    %491 = vmatpush1.msra.mxu0 0.0
    %492 = vmatprep.subr.mxu0 0.0
    %493 = vmatpush1.msra.mxu0 0.0
    %494 = vmatprep.subr.mxu0 0.0
    %495 = vmatpush1.msra.mxu0 0.0
    %496 = vmatprep.subr.mxu0 0.0
    %497 = vmatpush1.msra.mxu0 0.0
    %498 = vmatprep.subr.mxu0 0.0
    %499 = vmatpush1.msra.mxu0 0.0
    %500 = vmatprep.subr.mxu0 0.0
    %501 = vmatpush1.msra.mxu0 0.0
    %502 = vmatprep.subr.mxu0 0.0
    %503 = vmatpush1.msra.mxu0 0.0
    %504 = vmatprep.subr.mxu0 0.0
    %505 = vmatpush1.msra.mxu0 0.0
    %506 = vmatprep.subr.mxu0 0.0
    %507 = vmatpush1.msra.mxu0 0.0
    %508 = vmatprep.subr.mxu0 0.0
    %509 = vmatpush1.msra.mxu0 0.0
    %510 = vmatprep.subr.mxu0 0.0
    %511 = vmatpush1.msra.mxu0 0.0
    %512 = vmatprep.subr.mxu0 0.0
    %513 = vmatpush1.msra.mxu0 0.0
    %514 = vmatprep.subr.mxu0 0.0
    %515 = vmatpush1.msra.mxu0 0.0
    %516 = vmatprep.subr.mxu0 0.0
    %517 = vmatpush1.msra.mxu0 0.0
    %518 = vmatprep.subr.mxu0 0.0
    %519 = vmatpush1.msra.mxu0 0.0
    %520 = vmatprep.subr.mxu0 0.0
    %521 = vmatpush1.msra.mxu0 0.0
    %522 = vmatprep.mubr.f32.mxu0 0.0
    %523 = vmatmul.mubr.f32.gmra.mrb[0].mxu0 %v456
    %v524 = vpop.f32.mrb[0].mxu0
    %v525 = vadd.f32 0.0, %v524
    %v526 = vpop.f32.mrb[0].mxu0
    %v527 = vadd.f32 0.0, %v526
    %528 = vdwg.mxu0
    %529 = vmatprep.subr.mxu0 %v76
    %530 = vmatpush1.msra.mxu0 %v75
    %531 = vmatprep.subr.mxu0 %v80
    %532 = vmatpush1.msra.mxu0 %v79
    %533 = vmatprep.subr.mxu0 %v84
    %534 = vmatpush1.msra.mxu0 %v83
    %535 = vmatprep.subr.mxu0 %v88
    %536 = vmatpush1.msra.mxu0 %v87
    %537 = vmatprep.subr.mxu0 0.0
    %538 = vmatpush1.msra.mxu0 0.0
    %539 = vmatprep.subr.mxu0 0.0
    %540 = vmatpush1.msra.mxu0 0.0
    %541 = vmatprep.subr.mxu0 0.0
    %542 = vmatpush1.msra.mxu0 0.0
    %543 = vmatprep.subr.mxu0 0.0
    %544 = vmatpush1.msra.mxu0 0.0
    %545 = vmatprep.subr.mxu0 0.0
    %546 = vmatpush1.msra.mxu0 0.0
    %547 = vmatprep.subr.mxu0 0.0
    %548 = vmatpush1.msra.mxu0 0.0
    %549 = vmatprep.subr.mxu0 0.0
    %550 = vmatpush1.msra.mxu0 0.0
    %551 = vmatprep.subr.mxu0 0.0
    %552 = vmatpush1.msra.mxu0 0.0
    %553 = vmatprep.subr.mxu0 0.0
    %554 = vmatpush1.msra.mxu0 0.0
    %555 = vmatprep.subr.mxu0 0.0
    %556 = vmatpush1.msra.mxu0 0.0
    %557 = vmatprep.subr.mxu0 0.0
    %558 = vmatpush1.msra.mxu0 0.0
    %559 = vmatprep.subr.mxu0 0.0
    %560 = vmatpush1.msra.mxu0 0.0
    %561 = vmatprep.subr.mxu0 0.0
    %562 = vmatpush1.msra.mxu0 0.0
    %563 = vmatprep.subr.mxu0 0.0
    %564 = vmatpush1.msra.mxu0 0.0
    %565 = vmatprep.subr.mxu0 0.0
    %566 = vmatpush1.msra.mxu0 0.0
    %567 = vmatprep.subr.mxu0 0.0
    %568 = vmatpush1.msra.mxu0 0.0
    %569 = vmatprep.subr.mxu0 0.0
    %570 = vmatpush1.msra.mxu0 0.0
    %571 = vmatprep.subr.mxu0 0.0
    %572 = vmatpush1.msra.mxu0 0.0
    %573 = vmatprep.subr.mxu0 0.0
    %574 = vmatpush1.msra.mxu0 0.0
    %575 = vmatprep.subr.mxu0 0.0
    %576 = vmatpush1.msra.mxu0 0.0
    %577 = vmatprep.subr.mxu0 0.0
    %578 = vmatpush1.msra.mxu0 0.0
    %579 = vmatprep.subr.mxu0 0.0
    %580 = vmatpush1.msra.mxu0 0.0
    %581 = vmatprep.subr.mxu0 0.0
    %582 = vmatpush1.msra.mxu0 0.0
    %583 = vmatprep.subr.mxu0 0.0
    %584 = vmatpush1.msra.mxu0 0.0
    %585 = vmatprep.subr.mxu0 0.0
    %586 = vmatpush1.msra.mxu0 0.0
    %587 = vmatprep.subr.mxu0 0.0
    %588 = vmatpush1.msra.mxu0 0.0
    %589 = vmatprep.subr.mxu0 0.0
    %590 = vmatpush1.msra.mxu0 0.0
    %591 = vmatprep.subr.mxu0 0.0
    %592 = vmatpush1.msra.mxu0 0.0
    %593 = vmatprep.mubr.f32.mxu0 0.0
    %594 = vmatmul.mubr.f32.gmra.mrb[0].mxu0 %v456
    %v595 = vpop.f32.mrb[0].mxu0
    %v596 = vadd.f32 0.0, %v595
    %v597 = vpop.f32.mrb[0].mxu0
    %v598 = vadd.f32 0.0, %v597
    %599 = vdwg.mxu0
    %v600 = vadd.f32 %v451, %v525
    %v601 = vadd.f32 %v452, %v527
    %v602 = vadd.f32 %v453, %v596
    %v603 = vadd.f32 %v454, %v598
    %v604 = vxor.u32 %v600, 2147483648
    %v605 = vmul.f32 %v604, 1.442695
    %v606 = vpow.pop %v605
    %v607 = vadd.f32 %v606, 1.0
    %v608 = vrcp.pop %v607
    %v609 = vmul.f32 1.0, %v608
    %v610 = vxor.u32 %v601, 2147483648
    %v611 = vmul.f32 %v610, 1.442695
    %v612 = vpow.pop %v611
    %v613 = vadd.f32 %v612, 1.0
    %v614 = vrcp.pop %v613
    %v615 = vmul.f32 1.0, %v614
    %v616 = vtanh.pop %v602
    %v617 = vxor.u32 %v603, 2147483648
    %v618 = vmul.f32 %v617, 1.442695
    %v619 = vpow.pop %v618
    %v620 = vadd.f32 %v619, 1.0
    %v621 = vrcp.pop %v620
    %v622 = vmul.f32 1.0, %v621
    %v623 = vmul.f32 %v615, %v445
    %v624 = vmul.f32 %v609, %v616
    %v625 = vadd.f32 %v623, %v624
    %v626 = vtanh.pop %v625
    %v627 = vmul.f32 %v622, %v626
    %s628 = scalar_lea.vmem [#allocation10], 16
    %629 = vst [vmem:[%s628] sm:$0xff] %v627
    %s630 = scalar_lea.vmem [#allocation2], 96
    %v631 = vld [vmem:[%s630] sm:$0xff]
    %v632 = vld [vmem:[%s630 + $0x8] sm:$0xff]
    %v633 = vld [vmem:[%s630 + $0x10] sm:$0xff]
    %v634 = vld [vmem:[%s630 + $0x18] sm:$0xff]
    %v636 = vsel %vm95, %v627, 0
    %638 = vmatprep.subr.mxu0 %v74
    %639 = vmatpush1.msra.mxu0 %v73
    %640 = vmatprep.subr.mxu0 %v78
    %641 = vmatpush1.msra.mxu0 %v77
    %642 = vmatprep.subr.mxu0 %v82
    %643 = vmatpush1.msra.mxu0 %v81
    %644 = vmatprep.subr.mxu0 %v86
    %645 = vmatpush1.msra.mxu0 %v85
    %646 = vmatprep.subr.mxu0 0.0
    %647 = vmatpush1.msra.mxu0 0.0
    %648 = vmatprep.subr.mxu0 0.0
    %649 = vmatpush1.msra.mxu0 0.0
    %650 = vmatprep.subr.mxu0 0.0
    %651 = vmatpush1.msra.mxu0 0.0
    %652 = vmatprep.subr.mxu0 0.0
    %653 = vmatpush1.msra.mxu0 0.0
    %654 = vmatprep.subr.mxu0 0.0
    %655 = vmatpush1.msra.mxu0 0.0
    %656 = vmatprep.subr.mxu0 0.0
    %657 = vmatpush1.msra.mxu0 0.0
    %658 = vmatprep.subr.mxu0 0.0
    %659 = vmatpush1.msra.mxu0 0.0
    %660 = vmatprep.subr.mxu0 0.0
    %661 = vmatpush1.msra.mxu0 0.0
    %662 = vmatprep.subr.mxu0 0.0
    %663 = vmatpush1.msra.mxu0 0.0
    %664 = vmatprep.subr.mxu0 0.0
    %665 = vmatpush1.msra.mxu0 0.0
    %666 = vmatprep.subr.mxu0 0.0
    %667 = vmatpush1.msra.mxu0 0.0
    %668 = vmatprep.subr.mxu0 0.0
    %669 = vmatpush1.msra.mxu0 0.0
    %670 = vmatprep.subr.mxu0 0.0
    %671 = vmatpush1.msra.mxu0 0.0
    %672 = vmatprep.subr.mxu0 0.0
    %673 = vmatpush1.msra.mxu0 0.0
    %674 = vmatprep.subr.mxu0 0.0
    %675 = vmatpush1.msra.mxu0 0.0
    %676 = vmatprep.subr.mxu0 0.0
    %677 = vmatpush1.msra.mxu0 0.0
    %678 = vmatprep.subr.mxu0 0.0
    %679 = vmatpush1.msra.mxu0 0.0
    %680 = vmatprep.subr.mxu0 0.0
    %681 = vmatpush1.msra.mxu0 0.0
    %682 = vmatprep.subr.mxu0 0.0
    %683 = vmatpush1.msra.mxu0 0.0
    %684 = vmatprep.subr.mxu0 0.0
    %685 = vmatpush1.msra.mxu0 0.0
    %686 = vmatprep.subr.mxu0 0.0
    %687 = vmatpush1.msra.mxu0 0.0
    %688 = vmatprep.subr.mxu0 0.0
    %689 = vmatpush1.msra.mxu0 0.0
    %690 = vmatprep.subr.mxu0 0.0
    %691 = vmatpush1.msra.mxu0 0.0
    %692 = vmatprep.subr.mxu0 0.0
    %693 = vmatpush1.msra.mxu0 0.0
    %694 = vmatprep.subr.mxu0 0.0
    %695 = vmatpush1.msra.mxu0 0.0
    %696 = vmatprep.subr.mxu0 0.0
    %697 = vmatpush1.msra.mxu0 0.0
    %698 = vmatprep.subr.mxu0 0.0
    %699 = vmatpush1.msra.mxu0 0.0
    %700 = vmatprep.subr.mxu0 0.0
    %701 = vmatpush1.msra.mxu0 0.0
    %702 = vmatprep.mubr.f32.mxu0 0.0
    %703 = vmatmul.mubr.f32.gmra.mrb[0].mxu0 %v636
    %v704 = vpop.f32.mrb[0].mxu0
    %v705 = vadd.f32 0.0, %v704
    %v706 = vpop.f32.mrb[0].mxu0
    %v707 = vadd.f32 0.0, %v706
    %708 = vdwg.mxu0
    %709 = vmatprep.subr.mxu0 %v76
    %710 = vmatpush1.msra.mxu0 %v75
    %711 = vmatprep.subr.mxu0 %v80
    %712 = vmatpush1.msra.mxu0 %v79
    %713 = vmatprep.subr.mxu0 %v84
    %714 = vmatpush1.msra.mxu0 %v83
    %715 = vmatprep.subr.mxu0 %v88
    %716 = vmatpush1.msra.mxu0 %v87
    %717 = vmatprep.subr.mxu0 0.0
    %718 = vmatpush1.msra.mxu0 0.0
    %719 = vmatprep.subr.mxu0 0.0
    %720 = vmatpush1.msra.mxu0 0.0
    %721 = vmatprep.subr.mxu0 0.0
    %722 = vmatpush1.msra.mxu0 0.0
    %723 = vmatprep.subr.mxu0 0.0
    %724 = vmatpush1.msra.mxu0 0.0
    %725 = vmatprep.subr.mxu0 0.0
    %726 = vmatpush1.msra.mxu0 0.0
    %727 = vmatprep.subr.mxu0 0.0
    %728 = vmatpush1.msra.mxu0 0.0
    %729 = vmatprep.subr.mxu0 0.0
    %730 = vmatpush1.msra.mxu0 0.0
    %731 = vmatprep.subr.mxu0 0.0
    %732 = vmatpush1.msra.mxu0 0.0
    %733 = vmatprep.subr.mxu0 0.0
    %734 = vmatpush1.msra.mxu0 0.0
    %735 = vmatprep.subr.mxu0 0.0
    %736 = vmatpush1.msra.mxu0 0.0
    %737 = vmatprep.subr.mxu0 0.0
    %738 = vmatpush1.msra.mxu0 0.0
    %739 = vmatprep.subr.mxu0 0.0
    %740 = vmatpush1.msra.mxu0 0.0
    %741 = vmatprep.subr.mxu0 0.0
    %742 = vmatpush1.msra.mxu0 0.0
    %743 = vmatprep.subr.mxu0 0.0
    %744 = vmatpush1.msra.mxu0 0.0
    %745 = vmatprep.subr.mxu0 0.0
    %746 = vmatpush1.msra.mxu0 0.0
    %747 = vmatprep.subr.mxu0 0.0
    %748 = vmatpush1.msra.mxu0 0.0
    %749 = vmatprep.subr.mxu0 0.0
    %750 = vmatpush1.msra.mxu0 0.0
    %751 = vmatprep.subr.mxu0 0.0
    %752 = vmatpush1.msra.mxu0 0.0
    %753 = vmatprep.subr.mxu0 0.0
    %754 = vmatpush1.msra.mxu0 0.0
    %755 = vmatprep.subr.mxu0 0.0
    %756 = vmatpush1.msra.mxu0 0.0
    %757 = vmatprep.subr.mxu0 0.0
    %758 = vmatpush1.msra.mxu0 0.0
    %759 = vmatprep.subr.mxu0 0.0
    %760 = vmatpush1.msra.mxu0 0.0
    %761 = vmatprep.subr.mxu0 0.0
    %762 = vmatpush1.msra.mxu0 0.0
    %763 = vmatprep.subr.mxu0 0.0
    %764 = vmatpush1.msra.mxu0 0.0
    %765 = vmatprep.subr.mxu0 0.0
    %766 = vmatpush1.msra.mxu0 0.0
    %767 = vmatprep.subr.mxu0 0.0
    %768 = vmatpush1.msra.mxu0 0.0
    %769 = vmatprep.subr.mxu0 0.0
    %770 = vmatpush1.msra.mxu0 0.0
    %771 = vmatprep.subr.mxu0 0.0
    %772 = vmatpush1.msra.mxu0 0.0
    %773 = vmatprep.mubr.f32.mxu0 0.0
    %774 = vmatmul.mubr.f32.gmra.mrb[0].mxu0 %v636
    %v775 = vpop.f32.mrb[0].mxu0
    %v776 = vadd.f32 0.0, %v775
    %v777 = vpop.f32.mrb[0].mxu0
    %v778 = vadd.f32 0.0, %v777
    %779 = vdwg.mxu0
    %v780 = vadd.f32 %v631, %v705
    %v781 = vadd.f32 %v632, %v707
    %v782 = vadd.f32 %v633, %v776
    %v783 = vadd.f32 %v634, %v778
    %v784 = vxor.u32 %v780, 2147483648
    %v785 = vmul.f32 %v784, 1.442695
    %v786 = vpow.pop %v785
    %v787 = vadd.f32 %v786, 1.0
    %v788 = vrcp.pop %v787
    %v789 = vmul.f32 1.0, %v788
    %v790 = vxor.u32 %v781, 2147483648
    %v791 = vmul.f32 %v790, 1.442695
    %v792 = vpow.pop %v791
    %v793 = vadd.f32 %v792, 1.0
    %v794 = vrcp.pop %v793
    %v795 = vmul.f32 1.0, %v794
    %v796 = vtanh.pop %v782
    %v797 = vxor.u32 %v783, 2147483648
    %v798 = vmul.f32 %v797, 1.442695
    %v799 = vpow.pop %v798
    %v800 = vadd.f32 %v799, 1.0
    %v801 = vrcp.pop %v800
    %v802 = vmul.f32 1.0, %v801
    %v803 = vmul.f32 %v795, %v625
    %v804 = vmul.f32 %v789, %v796
    %v805 = vadd.f32 %v803, %v804
    %v806 = vtanh.pop %v805
    %v807 = vmul.f32 %v802, %v806
    %s808 = scalar_lea.vmem [#allocation10], 24
    %809 = vst [vmem:[%s808] sm:$0xff] %v807
    %s810 = scalar_lea.vmem [#allocation2], 128
    %v811 = vld [vmem:[%s810] sm:$0xff]
    %v812 = vld [vmem:[%s810 + $0x8] sm:$0xff]
    %v813 = vld [vmem:[%s810 + $0x10] sm:$0xff]
    %v814 = vld [vmem:[%s810 + $0x18] sm:$0xff]
    %v816 = vsel %vm95, %v807, 0
    %818 = vmatprep.subr.mxu0 %v74
    %819 = vmatpush1.msra.mxu0 %v73
    %820 = vmatprep.subr.mxu0 %v78
    %821 = vmatpush1.msra.mxu0 %v77
    %822 = vmatprep.subr.mxu0 %v82
    %823 = vmatpush1.msra.mxu0 %v81
    %824 = vmatprep.subr.mxu0 %v86
    %825 = vmatpush1.msra.mxu0 %v85
    %826 = vmatprep.subr.mxu0 0.0
    %827 = vmatpush1.msra.mxu0 0.0
    %828 = vmatprep.subr.mxu0 0.0
    %829 = vmatpush1.msra.mxu0 0.0
    %830 = vmatprep.subr.mxu0 0.0
    %831 = vmatpush1.msra.mxu0 0.0
    %832 = vmatprep.subr.mxu0 0.0
    %833 = vmatpush1.msra.mxu0 0.0
    %834 = vmatprep.subr.mxu0 0.0
    %835 = vmatpush1.msra.mxu0 0.0
    %836 = vmatprep.subr.mxu0 0.0
    %837 = vmatpush1.msra.mxu0 0.0
    %838 = vmatprep.subr.mxu0 0.0
    %839 = vmatpush1.msra.mxu0 0.0
    %840 = vmatprep.subr.mxu0 0.0
    %841 = vmatpush1.msra.mxu0 0.0
    %842 = vmatprep.subr.mxu0 0.0
    %843 = vmatpush1.msra.mxu0 0.0
    %844 = vmatprep.subr.mxu0 0.0
    %845 = vmatpush1.msra.mxu0 0.0
    %846 = vmatprep.subr.mxu0 0.0
    %847 = vmatpush1.msra.mxu0 0.0
    %848 = vmatprep.subr.mxu0 0.0
    %849 = vmatpush1.msra.mxu0 0.0
    %850 = vmatprep.subr.mxu0 0.0
    %851 = vmatpush1.msra.mxu0 0.0
    %852 = vmatprep.subr.mxu0 0.0
    %853 = vmatpush1.msra.mxu0 0.0
    %854 = vmatprep.subr.mxu0 0.0
    %855 = vmatpush1.msra.mxu0 0.0
    %856 = vmatprep.subr.mxu0 0.0
    %857 = vmatpush1.msra.mxu0 0.0
    %858 = vmatprep.subr.mxu0 0.0
    %859 = vmatpush1.msra.mxu0 0.0
    %860 = vmatprep.subr.mxu0 0.0
    %861 = vmatpush1.msra.mxu0 0.0
    %862 = vmatprep.subr.mxu0 0.0
    %863 = vmatpush1.msra.mxu0 0.0
    %864 = vmatprep.subr.mxu0 0.0
    %865 = vmatpush1.msra.mxu0 0.0
    %866 = vmatprep.subr.mxu0 0.0
    %867 = vmatpush1.msra.mxu0 0.0
    %868 = vmatprep.subr.mxu0 0.0
    %869 = vmatpush1.msra.mxu0 0.0
    %870 = vmatprep.subr.mxu0 0.0
    %871 = vmatpush1.msra.mxu0 0.0
    %872 = vmatprep.subr.mxu0 0.0
    %873 = vmatpush1.msra.mxu0 0.0
    %874 = vmatprep.subr.mxu0 0.0
    %875 = vmatpush1.msra.mxu0 0.0
    %876 = vmatprep.subr.mxu0 0.0
    %877 = vmatpush1.msra.mxu0 0.0
    %878 = vmatprep.subr.mxu0 0.0
    %879 = vmatpush1.msra.mxu0 0.0
    %880 = vmatprep.subr.mxu0 0.0
    %881 = vmatpush1.msra.mxu0 0.0
    %882 = vmatprep.mubr.f32.mxu0 0.0
    %883 = vmatmul.mubr.f32.gmra.mrb[0].mxu0 %v816
    %v884 = vpop.f32.mrb[0].mxu0
    %v885 = vadd.f32 0.0, %v884
    %v886 = vpop.f32.mrb[0].mxu0
    %v887 = vadd.f32 0.0, %v886
    %888 = vdwg.mxu0
    %889 = vmatprep.subr.mxu0 %v76
    %890 = vmatpush1.msra.mxu0 %v75
    %891 = vmatprep.subr.mxu0 %v80
    %892 = vmatpush1.msra.mxu0 %v79
    %893 = vmatprep.subr.mxu0 %v84
    %894 = vmatpush1.msra.mxu0 %v83
    %895 = vmatprep.subr.mxu0 %v88
    %896 = vmatpush1.msra.mxu0 %v87
    %897 = vmatprep.subr.mxu0 0.0
    %898 = vmatpush1.msra.mxu0 0.0
    %899 = vmatprep.subr.mxu0 0.0
    %900 = vmatpush1.msra.mxu0 0.0
    %901 = vmatprep.subr.mxu0 0.0
    %902 = vmatpush1.msra.mxu0 0.0
    %903 = vmatprep.subr.mxu0 0.0
    %904 = vmatpush1.msra.mxu0 0.0
    %905 = vmatprep.subr.mxu0 0.0
    %906 = vmatpush1.msra.mxu0 0.0
    %907 = vmatprep.subr.mxu0 0.0
    %908 = vmatpush1.msra.mxu0 0.0
    %909 = vmatprep.subr.mxu0 0.0
    %910 = vmatpush1.msra.mxu0 0.0
    %911 = vmatprep.subr.mxu0 0.0
    %912 = vmatpush1.msra.mxu0 0.0
    %913 = vmatprep.subr.mxu0 0.0
    %914 = vmatpush1.msra.mxu0 0.0
    %915 = vmatprep.subr.mxu0 0.0
    %916 = vmatpush1.msra.mxu0 0.0
    %917 = vmatprep.subr.mxu0 0.0
    %918 = vmatpush1.msra.mxu0 0.0
    %919 = vmatprep.subr.mxu0 0.0
    %920 = vmatpush1.msra.mxu0 0.0
    %921 = vmatprep.subr.mxu0 0.0
    %922 = vmatpush1.msra.mxu0 0.0
    %923 = vmatprep.subr.mxu0 0.0
    %924 = vmatpush1.msra.mxu0 0.0
    %925 = vmatprep.subr.mxu0 0.0
    %926 = vmatpush1.msra.mxu0 0.0
    %927 = vmatprep.subr.mxu0 0.0
    %928 = vmatpush1.msra.mxu0 0.0
    %929 = vmatprep.subr.mxu0 0.0
    %930 = vmatpush1.msra.mxu0 0.0
    %931 = vmatprep.subr.mxu0 0.0
    %932 = vmatpush1.msra.mxu0 0.0
    %933 = vmatprep.subr.mxu0 0.0
    %934 = vmatpush1.msra.mxu0 0.0
    %935 = vmatprep.subr.mxu0 0.0
    %936 = vmatpush1.msra.mxu0 0.0
    %937 = vmatprep.subr.mxu0 0.0
    %938 = vmatpush1.msra.mxu0 0.0
    %939 = vmatprep.subr.mxu0 0.0
    %940 = vmatpush1.msra.mxu0 0.0
    %941 = vmatprep.subr.mxu0 0.0
    %942 = vmatpush1.msra.mxu0 0.0
    %943 = vmatprep.subr.mxu0 0.0
    %944 = vmatpush1.msra.mxu0 0.0
    %945 = vmatprep.subr.mxu0 0.0
    %946 = vmatpush1.msra.mxu0 0.0
    %947 = vmatprep.subr.mxu0 0.0
    %948 = vmatpush1.msra.mxu0 0.0
    %949 = vmatprep.subr.mxu0 0.0
    %950 = vmatpush1.msra.mxu0 0.0
    %951 = vmatprep.subr.mxu0 0.0
    %952 = vmatpush1.msra.mxu0 0.0
    %953 = vmatprep.mubr.f32.mxu0 0.0
    %954 = vmatmul.mubr.f32.gmra.mrb[0].mxu0 %v816
    %v955 = vpop.f32.mrb[0].mxu0
    %v956 = vadd.f32 0.0, %v955
    %v957 = vpop.f32.mrb[0].mxu0
    %v958 = vadd.f32 0.0, %v957
    %959 = vdwg.mxu0
    %v960 = vadd.f32 %v811, %v885
    %v961 = vadd.f32 %v812, %v887
    %v962 = vadd.f32 %v813, %v956
    %v963 = vadd.f32 %v814, %v958
    %v964 = vxor.u32 %v960, 2147483648
    %v965 = vmul.f32 %v964, 1.442695
    %v966 = vpow.pop %v965
    %v967 = vadd.f32 %v966, 1.0
    %v968 = vrcp.pop %v967
    %v969 = vmul.f32 1.0, %v968
    %v970 = vxor.u32 %v961, 2147483648
    %v971 = vmul.f32 %v970, 1.442695
    %v972 = vpow.pop %v971
    %v973 = vadd.f32 %v972, 1.0
    %v974 = vrcp.pop %v973
    %v975 = vmul.f32 1.0, %v974
    %v976 = vtanh.pop %v962
    %v977 = vxor.u32 %v963, 2147483648
    %v978 = vmul.f32 %v977, 1.442695
    %v979 = vpow.pop %v978
    %v980 = vadd.f32 %v979, 1.0
    %v981 = vrcp.pop %v980
    %v982 = vmul.f32 1.0, %v981
    %v983 = vmul.f32 %v975, %v805
    %v984 = vmul.f32 %v969, %v976
    %v985 = vadd.f32 %v983, %v984
    %v986 = vtanh.pop %v985
    %v987 = vmul.f32 %v982, %v986
    %s988 = scalar_lea.vmem [#allocation10], 32
    %989 = vst [vmem:[%s988] sm:$0xff] %v987
    %s990 = scalar_lea.vmem [#allocation2], 160
    %v991 = vld [vmem:[%s990] sm:$0xff]
    %v992 = vld [vmem:[%s990 + $0x8] sm:$0xff]
    %v993 = vld [vmem:[%s990 + $0x10] sm:$0xff]
    %v994 = vld [vmem:[%s990 + $0x18] sm:$0xff]
    %v996 = vsel %vm95, %v987, 0
    %998 = vmatprep.subr.mxu0 %v74
    %999 = vmatpush1.msra.mxu0 %v73
    %1000 = vmatprep.subr.mxu0 %v78
    %1001 = vmatpush1.msra.mxu0 %v77
    %1002 = vmatprep.subr.mxu0 %v82
    %1003 = vmatpush1.msra.mxu0 %v81
    %1004 = vmatprep.subr.mxu0 %v86
    %1005 = vmatpush1.msra.mxu0 %v85
    %1006 = vmatprep.subr.mxu0 0.0
    %1007 = vmatpush1.msra.mxu0 0.0
    %1008 = vmatprep.subr.mxu0 0.0
    %1009 = vmatpush1.msra.mxu0 0.0
    %1010 = vmatprep.subr.mxu0 0.0
    %1011 = vmatpush1.msra.mxu0 0.0
    %1012 = vmatprep.subr.mxu0 0.0
    %1013 = vmatpush1.msra.mxu0 0.0
    %1014 = vmatprep.subr.mxu0 0.0
    %1015 = vmatpush1.msra.mxu0 0.0
    %1016 = vmatprep.subr.mxu0 0.0
    %1017 = vmatpush1.msra.mxu0 0.0
    %1018 = vmatprep.subr.mxu0 0.0
    %1019 = vmatpush1.msra.mxu0 0.0
    %1020 = vmatprep.subr.mxu0 0.0
    %1021 = vmatpush1.msra.mxu0 0.0
    %1022 = vmatprep.subr.mxu0 0.0
    %1023 = vmatpush1.msra.mxu0 0.0
    %1024 = vmatprep.subr.mxu0 0.0
    %1025 = vmatpush1.msra.mxu0 0.0
    %1026 = vmatprep.subr.mxu0 0.0
    %1027 = vmatpush1.msra.mxu0 0.0
    %1028 = vmatprep.subr.mxu0 0.0
    %1029 = vmatpush1.msra.mxu0 0.0
    %1030 = vmatprep.subr.mxu0 0.0
    %1031 = vmatpush1.msra.mxu0 0.0
    %1032 = vmatprep.subr.mxu0 0.0
    %1033 = vmatpush1.msra.mxu0 0.0
    %1034 = vmatprep.subr.mxu0 0.0
    %1035 = vmatpush1.msra.mxu0 0.0
    %1036 = vmatprep.subr.mxu0 0.0
    %1037 = vmatpush1.msra.mxu0 0.0
    %1038 = vmatprep.subr.mxu0 0.0
    %1039 = vmatpush1.msra.mxu0 0.0
    %1040 = vmatprep.subr.mxu0 0.0
    %1041 = vmatpush1.msra.mxu0 0.0
    %1042 = vmatprep.subr.mxu0 0.0
    %1043 = vmatpush1.msra.mxu0 0.0
    %1044 = vmatprep.subr.mxu0 0.0
    %1045 = vmatpush1.msra.mxu0 0.0
    %1046 = vmatprep.subr.mxu0 0.0
    %1047 = vmatpush1.msra.mxu0 0.0
    %1048 = vmatprep.subr.mxu0 0.0
    %1049 = vmatpush1.msra.mxu0 0.0
    %1050 = vmatprep.subr.mxu0 0.0
    %1051 = vmatpush1.msra.mxu0 0.0
    %1052 = vmatprep.subr.mxu0 0.0
    %1053 = vmatpush1.msra.mxu0 0.0
    %1054 = vmatprep.subr.mxu0 0.0
    %1055 = vmatpush1.msra.mxu0 0.0
    %1056 = vmatprep.subr.mxu0 0.0
    %1057 = vmatpush1.msra.mxu0 0.0
    %1058 = vmatprep.subr.mxu0 0.0
    %1059 = vmatpush1.msra.mxu0 0.0
    %1060 = vmatprep.subr.mxu0 0.0
    %1061 = vmatpush1.msra.mxu0 0.0
    %1062 = vmatprep.mubr.f32.mxu0 0.0
    %1063 = vmatmul.mubr.f32.gmra.mrb[0].mxu0 %v996
    %v1064 = vpop.f32.mrb[0].mxu0
    %v1065 = vadd.f32 0.0, %v1064
    %v1066 = vpop.f32.mrb[0].mxu0
    %v1067 = vadd.f32 0.0, %v1066
    %1068 = vdwg.mxu0
    %1069 = vmatprep.subr.mxu0 %v76
    %1070 = vmatpush1.msra.mxu0 %v75
    %1071 = vmatprep.subr.mxu0 %v80
    %1072 = vmatpush1.msra.mxu0 %v79
    %1073 = vmatprep.subr.mxu0 %v84
    %1074 = vmatpush1.msra.mxu0 %v83
    %1075 = vmatprep.subr.mxu0 %v88
    %1076 = vmatpush1.msra.mxu0 %v87
    %1077 = vmatprep.subr.mxu0 0.0
    %1078 = vmatpush1.msra.mxu0 0.0
    %1079 = vmatprep.subr.mxu0 0.0
    %1080 = vmatpush1.msra.mxu0 0.0
    %1081 = vmatprep.subr.mxu0 0.0
    %1082 = vmatpush1.msra.mxu0 0.0
    %1083 = vmatprep.subr.mxu0 0.0
    %1084 = vmatpush1.msra.mxu0 0.0
    %1085 = vmatprep.subr.mxu0 0.0
    %1086 = vmatpush1.msra.mxu0 0.0
    %1087 = vmatprep.subr.mxu0 0.0
    %1088 = vmatpush1.msra.mxu0 0.0
    %1089 = vmatprep.subr.mxu0 0.0
    %1090 = vmatpush1.msra.mxu0 0.0
    %1091 = vmatprep.subr.mxu0 0.0
    %1092 = vmatpush1.msra.mxu0 0.0
    %1093 = vmatprep.subr.mxu0 0.0
    %1094 = vmatpush1.msra.mxu0 0.0
    %1095 = vmatprep.subr.mxu0 0.0
    %1096 = vmatpush1.msra.mxu0 0.0
    %1097 = vmatprep.subr.mxu0 0.0
    %1098 = vmatpush1.msra.mxu0 0.0
    %1099 = vmatprep.subr.mxu0 0.0
    %1100 = vmatpush1.msra.mxu0 0.0
    %1101 = vmatprep.subr.mxu0 0.0
    %1102 = vmatpush1.msra.mxu0 0.0
    %1103 = vmatprep.subr.mxu0 0.0
    %1104 = vmatpush1.msra.mxu0 0.0
    %1105 = vmatprep.subr.mxu0 0.0
    %1106 = vmatpush1.msra.mxu0 0.0
    %1107 = vmatprep.subr.mxu0 0.0
    %1108 = vmatpush1.msra.mxu0 0.0
    %1109 = vmatprep.subr.mxu0 0.0
    %1110 = vmatpush1.msra.mxu0 0.0
    %1111 = vmatprep.subr.mxu0 0.0
    %1112 = vmatpush1.msra.mxu0 0.0
    %1113 = vmatprep.subr.mxu0 0.0
    %1114 = vmatpush1.msra.mxu0 0.0
    %1115 = vmatprep.subr.mxu0 0.0
    %1116 = vmatpush1.msra.mxu0 0.0
    %1117 = vmatprep.subr.mxu0 0.0
    %1118 = vmatpush1.msra.mxu0 0.0
    %1119 = vmatprep.subr.mxu0 0.0
    %1120 = vmatpush1.msra.mxu0 0.0
    %1121 = vmatprep.subr.mxu0 0.0
    %1122 = vmatpush1.msra.mxu0 0.0
    %1123 = vmatprep.subr.mxu0 0.0
    %1124 = vmatpush1.msra.mxu0 0.0
    %1125 = vmatprep.subr.mxu0 0.0
    %1126 = vmatpush1.msra.mxu0 0.0
    %1127 = vmatprep.subr.mxu0 0.0
    %1128 = vmatpush1.msra.mxu0 0.0
    %1129 = vmatprep.subr.mxu0 0.0
    %1130 = vmatpush1.msra.mxu0 0.0
    %1131 = vmatprep.subr.mxu0 0.0
    %1132 = vmatpush1.msra.mxu0 0.0
    %1133 = vmatprep.mubr.f32.mxu0 0.0
    %1134 = vmatmul.mubr.f32.gmra.mrb[0].mxu0 %v996
    %v1135 = vpop.f32.mrb[0].mxu0
    %v1136 = vadd.f32 0.0, %v1135
    %v1137 = vpop.f32.mrb[0].mxu0
    %v1138 = vadd.f32 0.0, %v1137
    %1139 = vdwg.mxu0
    %v1140 = vadd.f32 %v991, %v1065
    %v1141 = vadd.f32 %v992, %v1067
    %v1142 = vadd.f32 %v993, %v1136
    %v1143 = vadd.f32 %v994, %v1138
    %v1144 = vxor.u32 %v1140, 2147483648
    %v1145 = vmul.f32 %v1144, 1.442695
    %v1146 = vpow.pop %v1145
    %v1147 = vadd.f32 %v1146, 1.0
    %v1148 = vrcp.pop %v1147
    %v1149 = vmul.f32 1.0, %v1148
    %v1150 = vxor.u32 %v1141, 2147483648
    %v1151 = vmul.f32 %v1150, 1.442695
    %v1152 = vpow.pop %v1151
    %v1153 = vadd.f32 %v1152, 1.0
    %v1154 = vrcp.pop %v1153
    %v1155 = vmul.f32 1.0, %v1154
    %v1156 = vtanh.pop %v1142
    %v1157 = vxor.u32 %v1143, 2147483648
    %v1158 = vmul.f32 %v1157, 1.442695
    %v1159 = vpow.pop %v1158
    %v1160 = vadd.f32 %v1159, 1.0
    %v1161 = vrcp.pop %v1160
    %v1162 = vmul.f32 1.0, %v1161
    %v1163 = vmul.f32 %v1155, %v985
    %v1164 = vmul.f32 %v1149, %v1156
    %v1165 = vadd.f32 %v1163, %v1164
    %v1166 = vtanh.pop %v1165
    %v1167 = vmul.f32 %v1162, %v1166
    %s1168 = scalar_lea.vmem [#allocation10], 40
    %1169 = vst [vmem:[%s1168] sm:$0xff] %v1167
    %s1170 = scalar_lea.vmem [#allocation2], 192
    %v1171 = vld [vmem:[%s1170] sm:$0xff]
    %v1172 = vld [vmem:[%s1170 + $0x8] sm:$0xff]
    %v1173 = vld [vmem:[%s1170 + $0x10] sm:$0xff]
    %v1174 = vld [vmem:[%s1170 + $0x18] sm:$0xff]
    %v1176 = vsel %vm95, %v1167, 0
    %1178 = vmatprep.subr.mxu0 %v74
    %1179 = vmatpush1.msra.mxu0 %v73
    %1180 = vmatprep.subr.mxu0 %v78
    %1181 = vmatpush1.msra.mxu0 %v77
    %1182 = vmatprep.subr.mxu0 %v82
    %1183 = vmatpush1.msra.mxu0 %v81
    %1184 = vmatprep.subr.mxu0 %v86
    %1185 = vmatpush1.msra.mxu0 %v85
    %1186 = vmatprep.subr.mxu0 0.0
    %1187 = vmatpush1.msra.mxu0 0.0
    %1188 = vmatprep.subr.mxu0 0.0
    %1189 = vmatpush1.msra.mxu0 0.0
    %1190 = vmatprep.subr.mxu0 0.0
    %1191 = vmatpush1.msra.mxu0 0.0
    %1192 = vmatprep.subr.mxu0 0.0
    %1193 = vmatpush1.msra.mxu0 0.0
    %1194 = vmatprep.subr.mxu0 0.0
    %1195 = vmatpush1.msra.mxu0 0.0
    %1196 = vmatprep.subr.mxu0 0.0
    %1197 = vmatpush1.msra.mxu0 0.0
    %1198 = vmatprep.subr.mxu0 0.0
    %1199 = vmatpush1.msra.mxu0 0.0
    %1200 = vmatprep.subr.mxu0 0.0
    %1201 = vmatpush1.msra.mxu0 0.0
    %1202 = vmatprep.subr.mxu0 0.0
    %1203 = vmatpush1.msra.mxu0 0.0
    %1204 = vmatprep.subr.mxu0 0.0
    %1205 = vmatpush1.msra.mxu0 0.0
    %1206 = vmatprep.subr.mxu0 0.0
    %1207 = vmatpush1.msra.mxu0 0.0
    %1208 = vmatprep.subr.mxu0 0.0
    %1209 = vmatpush1.msra.mxu0 0.0
    %1210 = vmatprep.subr.mxu0 0.0
    %1211 = vmatpush1.msra.mxu0 0.0
    %1212 = vmatprep.subr.mxu0 0.0
    %1213 = vmatpush1.msra.mxu0 0.0
    %1214 = vmatprep.subr.mxu0 0.0
    %1215 = vmatpush1.msra.mxu0 0.0
    %1216 = vmatprep.subr.mxu0 0.0
    %1217 = vmatpush1.msra.mxu0 0.0
    %1218 = vmatprep.subr.mxu0 0.0
    %1219 = vmatpush1.msra.mxu0 0.0
    %1220 = vmatprep.subr.mxu0 0.0
    %1221 = vmatpush1.msra.mxu0 0.0
    %1222 = vmatprep.subr.mxu0 0.0
    %1223 = vmatpush1.msra.mxu0 0.0
    %1224 = vmatprep.subr.mxu0 0.0
    %1225 = vmatpush1.msra.mxu0 0.0
    %1226 = vmatprep.subr.mxu0 0.0
    %1227 = vmatpush1.msra.mxu0 0.0
    %1228 = vmatprep.subr.mxu0 0.0
    %1229 = vmatpush1.msra.mxu0 0.0
    %1230 = vmatprep.subr.mxu0 0.0
    %1231 = vmatpush1.msra.mxu0 0.0
    %1232 = vmatprep.subr.mxu0 0.0
    %1233 = vmatpush1.msra.mxu0 0.0
    %1234 = vmatprep.subr.mxu0 0.0
    %1235 = vmatpush1.msra.mxu0 0.0
    %1236 = vmatprep.subr.mxu0 0.0
    %1237 = vmatpush1.msra.mxu0 0.0
    %1238 = vmatprep.subr.mxu0 0.0
    %1239 = vmatpush1.msra.mxu0 0.0
    %1240 = vmatprep.subr.mxu0 0.0
    %1241 = vmatpush1.msra.mxu0 0.0
    %1242 = vmatprep.mubr.f32.mxu0 0.0
    %1243 = vmatmul.mubr.f32.gmra.mrb[0].mxu0 %v1176
    %v1244 = vpop.f32.mrb[0].mxu0
    %v1245 = vadd.f32 0.0, %v1244
    %v1246 = vpop.f32.mrb[0].mxu0
    %v1247 = vadd.f32 0.0, %v1246
    %1248 = vdwg.mxu0
    %1249 = vmatprep.subr.mxu0 %v76
    %1250 = vmatpush1.msra.mxu0 %v75
    %1251 = vmatprep.subr.mxu0 %v80
    %1252 = vmatpush1.msra.mxu0 %v79
    %1253 = vmatprep.subr.mxu0 %v84
    %1254 = vmatpush1.msra.mxu0 %v83
    %1255 = vmatprep.subr.mxu0 %v88
    %1256 = vmatpush1.msra.mxu0 %v87
    %1257 = vmatprep.subr.mxu0 0.0
    %1258 = vmatpush1.msra.mxu0 0.0
    %1259 = vmatprep.subr.mxu0 0.0
    %1260 = vmatpush1.msra.mxu0 0.0
    %1261 = vmatprep.subr.mxu0 0.0
    %1262 = vmatpush1.msra.mxu0 0.0
    %1263 = vmatprep.subr.mxu0 0.0
    %1264 = vmatpush1.msra.mxu0 0.0
    %1265 = vmatprep.subr.mxu0 0.0
    %1266 = vmatpush1.msra.mxu0 0.0
    %1267 = vmatprep.subr.mxu0 0.0
    %1268 = vmatpush1.msra.mxu0 0.0
    %1269 = vmatprep.subr.mxu0 0.0
    %1270 = vmatpush1.msra.mxu0 0.0
    %1271 = vmatprep.subr.mxu0 0.0
    %1272 = vmatpush1.msra.mxu0 0.0
    %1273 = vmatprep.subr.mxu0 0.0
    %1274 = vmatpush1.msra.mxu0 0.0
    %1275 = vmatprep.subr.mxu0 0.0
    %1276 = vmatpush1.msra.mxu0 0.0
    %1277 = vmatprep.subr.mxu0 0.0
    %1278 = vmatpush1.msra.mxu0 0.0
    %1279 = vmatprep.subr.mxu0 0.0
    %1280 = vmatpush1.msra.mxu0 0.0
    %1281 = vmatprep.subr.mxu0 0.0
    %1282 = vmatpush1.msra.mxu0 0.0
    %1283 = vmatprep.subr.mxu0 0.0
    %1284 = vmatpush1.msra.mxu0 0.0
    %1285 = vmatprep.subr.mxu0 0.0
    %1286 = vmatpush1.msra.mxu0 0.0
    %1287 = vmatprep.subr.mxu0 0.0
    %1288 = vmatpush1.msra.mxu0 0.0
    %1289 = vmatprep.subr.mxu0 0.0
    %1290 = vmatpush1.msra.mxu0 0.0
    %1291 = vmatprep.subr.mxu0 0.0
    %1292 = vmatpush1.msra.mxu0 0.0
    %1293 = vmatprep.subr.mxu0 0.0
    %1294 = vmatpush1.msra.mxu0 0.0
    %1295 = vmatprep.subr.mxu0 0.0
    %1296 = vmatpush1.msra.mxu0 0.0
    %1297 = vmatprep.subr.mxu0 0.0
    %1298 = vmatpush1.msra.mxu0 0.0
    %1299 = vmatprep.subr.mxu0 0.0
    %1300 = vmatpush1.msra.mxu0 0.0
    %1301 = vmatprep.subr.mxu0 0.0
    %1302 = vmatpush1.msra.mxu0 0.0
    %1303 = vmatprep.subr.mxu0 0.0
    %1304 = vmatpush1.msra.mxu0 0.0
    %1305 = vmatprep.subr.mxu0 0.0
    %1306 = vmatpush1.msra.mxu0 0.0
    %1307 = vmatprep.subr.mxu0 0.0
    %1308 = vmatpush1.msra.mxu0 0.0
    %1309 = vmatprep.subr.mxu0 0.0
    %1310 = vmatpush1.msra.mxu0 0.0
    %1311 = vmatprep.subr.mxu0 0.0
    %1312 = vmatpush1.msra.mxu0 0.0
    %1313 = vmatprep.mubr.f32.mxu0 0.0
    %1314 = vmatmul.mubr.f32.gmra.mrb[0].mxu0 %v1176
    %v1315 = vpop.f32.mrb[0].mxu0
    %v1316 = vadd.f32 0.0, %v1315
    %v1317 = vpop.f32.mrb[0].mxu0
    %v1318 = vadd.f32 0.0, %v1317
    %1319 = vdwg.mxu0
    %v1320 = vadd.f32 %v1171, %v1245
    %v1321 = vadd.f32 %v1172, %v1247
    %v1322 = vadd.f32 %v1173, %v1316
    %v1323 = vadd.f32 %v1174, %v1318
    %v1324 = vxor.u32 %v1320, 2147483648
    %v1325 = vmul.f32 %v1324, 1.442695
    %v1326 = vpow.pop %v1325
    %v1327 = vadd.f32 %v1326, 1.0
    %v1328 = vrcp.pop %v1327
    %v1329 = vmul.f32 1.0, %v1328
    %v1330 = vxor.u32 %v1321, 2147483648
    %v1331 = vmul.f32 %v1330, 1.442695
    %v1332 = vpow.pop %v1331
    %v1333 = vadd.f32 %v1332, 1.0
    %v1334 = vrcp.pop %v1333
    %v1335 = vmul.f32 1.0, %v1334
    %v1336 = vtanh.pop %v1322
    %v1337 = vxor.u32 %v1323, 2147483648
    %v1338 = vmul.f32 %v1337, 1.442695
    %v1339 = vpow.pop %v1338
    %v1340 = vadd.f32 %v1339, 1.0
    %v1341 = vrcp.pop %v1340
    %v1342 = vmul.f32 1.0, %v1341
    %v1343 = vmul.f32 %v1335, %v1165
    %v1344 = vmul.f32 %v1329, %v1336
    %v1345 = vadd.f32 %v1343, %v1344
    %v1346 = vtanh.pop %v1345
    %v1347 = vmul.f32 %v1342, %v1346
    %s1348 = scalar_lea.vmem [#allocation10], 48
    %1349 = vst [vmem:[%s1348] sm:$0xff] %v1347
    %s1350 = scalar_lea.vmem [#allocation2], 224
    %v1351 = vld [vmem:[%s1350] sm:$0xff]
    %v1352 = vld [vmem:[%s1350 + $0x8] sm:$0xff]
    %v1353 = vld [vmem:[%s1350 + $0x10] sm:$0xff]
    %v1354 = vld [vmem:[%s1350 + $0x18] sm:$0xff]
    %v1356 = vsel %vm95, %v1347, 0
    %1358 = vmatprep.subr.mxu0 %v74
    %1359 = vmatpush1.msra.mxu0 %v73
    %1360 = vmatprep.subr.mxu0 %v78
    %1361 = vmatpush1.msra.mxu0 %v77
    %1362 = vmatprep.subr.mxu0 %v82
    %1363 = vmatpush1.msra.mxu0 %v81
    %1364 = vmatprep.subr.mxu0 %v86
    %1365 = vmatpush1.msra.mxu0 %v85
    %1366 = vmatprep.subr.mxu0 0.0
    %1367 = vmatpush1.msra.mxu0 0.0
    %1368 = vmatprep.subr.mxu0 0.0
    %1369 = vmatpush1.msra.mxu0 0.0
    %1370 = vmatprep.subr.mxu0 0.0
    %1371 = vmatpush1.msra.mxu0 0.0
    %1372 = vmatprep.subr.mxu0 0.0
    %1373 = vmatpush1.msra.mxu0 0.0
    %1374 = vmatprep.subr.mxu0 0.0
    %1375 = vmatpush1.msra.mxu0 0.0
    %1376 = vmatprep.subr.mxu0 0.0
    %1377 = vmatpush1.msra.mxu0 0.0
    %1378 = vmatprep.subr.mxu0 0.0
    %1379 = vmatpush1.msra.mxu0 0.0
    %1380 = vmatprep.subr.mxu0 0.0
    %1381 = vmatpush1.msra.mxu0 0.0
    %1382 = vmatprep.subr.mxu0 0.0
    %1383 = vmatpush1.msra.mxu0 0.0
    %1384 = vmatprep.subr.mxu0 0.0
    %1385 = vmatpush1.msra.mxu0 0.0
    %1386 = vmatprep.subr.mxu0 0.0
    %1387 = vmatpush1.msra.mxu0 0.0
    %1388 = vmatprep.subr.mxu0 0.0
    %1389 = vmatpush1.msra.mxu0 0.0
    %1390 = vmatprep.subr.mxu0 0.0
    %1391 = vmatpush1.msra.mxu0 0.0
    %1392 = vmatprep.subr.mxu0 0.0
    %1393 = vmatpush1.msra.mxu0 0.0
    %1394 = vmatprep.subr.mxu0 0.0
    %1395 = vmatpush1.msra.mxu0 0.0
    %1396 = vmatprep.subr.mxu0 0.0
    %1397 = vmatpush1.msra.mxu0 0.0
    %1398 = vmatprep.subr.mxu0 0.0
    %1399 = vmatpush1.msra.mxu0 0.0
    %1400 = vmatprep.subr.mxu0 0.0
    %1401 = vmatpush1.msra.mxu0 0.0
    %1402 = vmatprep.subr.mxu0 0.0
    %1403 = vmatpush1.msra.mxu0 0.0
    %1404 = vmatprep.subr.mxu0 0.0
    %1405 = vmatpush1.msra.mxu0 0.0
    %1406 = vmatprep.subr.mxu0 0.0
    %1407 = vmatpush1.msra.mxu0 0.0
    %1408 = vmatprep.subr.mxu0 0.0
    %1409 = vmatpush1.msra.mxu0 0.0
    %1410 = vmatprep.subr.mxu0 0.0
    %1411 = vmatpush1.msra.mxu0 0.0
    %1412 = vmatprep.subr.mxu0 0.0
    %1413 = vmatpush1.msra.mxu0 0.0
    %1414 = vmatprep.subr.mxu0 0.0
    %1415 = vmatpush1.msra.mxu0 0.0
    %1416 = vmatprep.subr.mxu0 0.0
    %1417 = vmatpush1.msra.mxu0 0.0
    %1418 = vmatprep.subr.mxu0 0.0
    %1419 = vmatpush1.msra.mxu0 0.0
    %1420 = vmatprep.subr.mxu0 0.0
    %1421 = vmatpush1.msra.mxu0 0.0
    %1422 = vmatprep.mubr.f32.mxu0 0.0
    %1423 = vmatmul.mubr.f32.gmra.mrb[0].mxu0 %v1356
    %v1424 = vpop.f32.mrb[0].mxu0
    %v1425 = vadd.f32 0.0, %v1424
    %v1426 = vpop.f32.mrb[0].mxu0
    %v1427 = vadd.f32 0.0, %v1426
    %1428 = vdwg.mxu0
    %1429 = vmatprep.subr.mxu0 %v76
    %1430 = vmatpush1.msra.mxu0 %v75
    %1431 = vmatprep.subr.mxu0 %v80
    %1432 = vmatpush1.msra.mxu0 %v79
    %1433 = vmatprep.subr.mxu0 %v84
    %1434 = vmatpush1.msra.mxu0 %v83
    %1435 = vmatprep.subr.mxu0 %v88
    %1436 = vmatpush1.msra.mxu0 %v87
    %1437 = vmatprep.subr.mxu0 0.0
    %1438 = vmatpush1.msra.mxu0 0.0
    %1439 = vmatprep.subr.mxu0 0.0
    %1440 = vmatpush1.msra.mxu0 0.0
    %1441 = vmatprep.subr.mxu0 0.0
    %1442 = vmatpush1.msra.mxu0 0.0
    %1443 = vmatprep.subr.mxu0 0.0
    %1444 = vmatpush1.msra.mxu0 0.0
    %1445 = vmatprep.subr.mxu0 0.0
    %1446 = vmatpush1.msra.mxu0 0.0
    %1447 = vmatprep.subr.mxu0 0.0
    %1448 = vmatpush1.msra.mxu0 0.0
    %1449 = vmatprep.subr.mxu0 0.0
    %1450 = vmatpush1.msra.mxu0 0.0
    %1451 = vmatprep.subr.mxu0 0.0
    %1452 = vmatpush1.msra.mxu0 0.0
    %1453 = vmatprep.subr.mxu0 0.0
    %1454 = vmatpush1.msra.mxu0 0.0
    %1455 = vmatprep.subr.mxu0 0.0
    %1456 = vmatpush1.msra.mxu0 0.0
    %1457 = vmatprep.subr.mxu0 0.0
    %1458 = vmatpush1.msra.mxu0 0.0
    %1459 = vmatprep.subr.mxu0 0.0
    %1460 = vmatpush1.msra.mxu0 0.0
    %1461 = vmatprep.subr.mxu0 0.0
    %1462 = vmatpush1.msra.mxu0 0.0
    %1463 = vmatprep.subr.mxu0 0.0
    %1464 = vmatpush1.msra.mxu0 0.0
    %1465 = vmatprep.subr.mxu0 0.0
    %1466 = vmatpush1.msra.mxu0 0.0
    %1467 = vmatprep.subr.mxu0 0.0
    %1468 = vmatpush1.msra.mxu0 0.0
    %1469 = vmatprep.subr.mxu0 0.0
    %1470 = vmatpush1.msra.mxu0 0.0
    %1471 = vmatprep.subr.mxu0 0.0
    %1472 = vmatpush1.msra.mxu0 0.0
    %1473 = vmatprep.subr.mxu0 0.0
    %1474 = vmatpush1.msra.mxu0 0.0
    %1475 = vmatprep.subr.mxu0 0.0
    %1476 = vmatpush1.msra.mxu0 0.0
    %1477 = vmatprep.subr.mxu0 0.0
    %1478 = vmatpush1.msra.mxu0 0.0
    %1479 = vmatprep.subr.mxu0 0.0
    %1480 = vmatpush1.msra.mxu0 0.0
    %1481 = vmatprep.subr.mxu0 0.0
    %1482 = vmatpush1.msra.mxu0 0.0
    %1483 = vmatprep.subr.mxu0 0.0
    %1484 = vmatpush1.msra.mxu0 0.0
    %1485 = vmatprep.subr.mxu0 0.0
    %1486 = vmatpush1.msra.mxu0 0.0
    %1487 = vmatprep.subr.mxu0 0.0
    %1488 = vmatpush1.msra.mxu0 0.0
    %1489 = vmatprep.subr.mxu0 0.0
    %1490 = vmatpush1.msra.mxu0 0.0
    %1491 = vmatprep.subr.mxu0 0.0
    %1492 = vmatpush1.msra.mxu0 0.0
    %1493 = vmatprep.mubr.f32.mxu0 0.0
    %1494 = vmatmul.mubr.f32.gmra.mrb[0].mxu0 %v1356
    %v1495 = vpop.f32.mrb[0].mxu0
    %v1496 = vadd.f32 0.0, %v1495
    %v1497 = vpop.f32.mrb[0].mxu0
    %v1498 = vadd.f32 0.0, %v1497
    %1499 = vdwg.mxu0
    %v1500 = vadd.f32 %v1351, %v1425
    %v1501 = vadd.f32 %v1352, %v1427
    %v1502 = vadd.f32 %v1353, %v1496
    %v1503 = vadd.f32 %v1354, %v1498
    %v1504 = vxor.u32 %v1500, 2147483648
    %v1505 = vmul.f32 %v1504, 1.442695
    %v1506 = vpow.pop %v1505
    %v1507 = vadd.f32 %v1506, 1.0
    %v1508 = vrcp.pop %v1507
    %v1509 = vmul.f32 1.0, %v1508
    %v1510 = vxor.u32 %v1501, 2147483648
    %v1511 = vmul.f32 %v1510, 1.442695
    %v1512 = vpow.pop %v1511
    %v1513 = vadd.f32 %v1512, 1.0
    %v1514 = vrcp.pop %v1513
    %v1515 = vmul.f32 1.0, %v1514
    %v1516 = vtanh.pop %v1502
    %v1517 = vxor.u32 %v1503, 2147483648
    %v1518 = vmul.f32 %v1517, 1.442695
    %v1519 = vpow.pop %v1518
    %v1520 = vadd.f32 %v1519, 1.0
    %v1521 = vrcp.pop %v1520
    %v1522 = vmul.f32 1.0, %v1521
    %v1523 = vmul.f32 %v1515, %v1345
    %v1524 = vmul.f32 %v1509, %v1516
    %v1525 = vadd.f32 %v1523, %v1524
    %v1526 = vtanh.pop %v1525
    %v1527 = vmul.f32 %v1522, %v1526
    %s1528 = scalar_lea.vmem [#allocation10], 56
    %1529 = vst [vmem:[%s1528] sm:$0xff] %v1527
    %1530 = vst [vmem:[#allocation11] sm:$0xff] %v1527
    %1531 = vst [vmem:[#allocation13] sm:$0xff] %v1525
    // Predicated region
    $region34: #{tpu_custom_call.1} parent=1 // pred_check
      _
    $region35: #{tpu_custom_call.1} parent=1 // pred_check_branch
      %1533 = sbr.rel (0) target = $region37
    $region36: #{tpu_custom_call.1} parent=1 // pred_region
      %s1535 = ssub.s32 1024, 1024
      %1536 = vsyncadd [#allocation4], %s1535
      %s1537 = sshll.u32 [#allocation10], 4
      %s1538 = int_to_ptr.vmem [resolvable:$true] %s1537
      %1543 = dma.vmem_to_hbm [thread:$0]  %s1538, 1024, %s4, [#allocation4], 128, 128, 8
    $region37: #{tpu_custom_call.1} parent=1 // pred_fallthru
      _
    // Predicated region
    $region38: #{tpu_custom_call.1} parent=1 // pred_check
      _
    $region39: #{tpu_custom_call.1} parent=1 // pred_check_branch
      %1545 = sbr.rel (0) target = $region41
    $region40: #{tpu_custom_call.1} parent=1 // pred_region
      %s1547 = ssub.s32 128, 128
      %1548 = vsyncadd [#allocation12], %s1547
      %s1550 = sshll.u32 [#allocation11], 4
      %s1551 = int_to_ptr.vmem [resolvable:$true] %s1550
      %1553 = dma.vmem_to_hbm [thread:$0]  %s1551, 128, %s5, [#allocation12]
    $region41: #{tpu_custom_call.1} parent=1 // pred_fallthru
      _
    // Predicated region
    $region42: #{tpu_custom_call.1} parent=1 // pred_check
      _
    $region43: #{tpu_custom_call.1} parent=1 // pred_check_branch
      %1555 = sbr.rel (0) target = $region45
    $region44: #{tpu_custom_call.1} parent=1 // pred_region
      %s1557 = ssub.s32 128, 128
      %1558 = vsyncadd [#allocation12], %s1557
      %s1560 = sshll.u32 [#allocation13], 4
      %s1561 = int_to_ptr.vmem [resolvable:$true] %s1560
      %1563 = dma.vmem_to_hbm [thread:$0]  %s1561, 128, %s6, [#allocation12]
    $region45: #{tpu_custom_call.1} parent=1 // pred_fallthru
      _
    // Predicated region
    $region46: #{tpu_custom_call.1} parent=1 // pred_check
      _
    $region47: #{tpu_custom_call.1} parent=1 // pred_check_branch
      %1565 = sbr.rel (0) target = $region49
    $region48: #{tpu_custom_call.1} parent=1 // pred_region
      %1566 = dma.done [#allocation4], 1024
    $region49: #{tpu_custom_call.1} parent=1 // pred_fallthru
      _
    // Predicated region
    $region50: #{tpu_custom_call.1} parent=1 // pred_check
      _
    $region51: #{tpu_custom_call.1} parent=1 // pred_check_branch
      %1568 = sbr.rel (0) target = $region53
    $region52: #{tpu_custom_call.1} parent=1 // pred_region
      %1569 = dma.done [#allocation12], 128
    $region53: #{tpu_custom_call.1} parent=1 // pred_fallthru
      _
    // Predicated region
    $region54: #{tpu_custom_call.1} parent=1 // pred_check
      _
    $region55: #{tpu_custom_call.1} parent=1 // pred_check_branch
      %1571 = sbr.rel (0) target = $region57
    $region56: #{tpu_custom_call.1} parent=1 // pred_region
      %1572 = dma.done [#allocation12], 128
    $region57: #{tpu_custom_call.1} parent=1 // pred_fallthru
      _
    %1573 = vsyncpa [#allocation3], 1
    %1574 = vsyncpa [#allocation6], 1
    %1575 = vsyncpa [#allocation9], 1
    %1576 = vsyncpa [#allocation4], 1
    %1577 = vsyncpa [#allocation12], 1

</llo_original>
